<compile_context>
chip_gen: v5e
topology: v5e:2x2
jax: 0.10.0
libtpu: 0.0.40
codegen_flags: <defaults>
</compile_context>

<pallas_src>
import functools

import jax
import jax.numpy as jnp
from jax.experimental import pallas as pl
from jax.experimental.pallas import tpu as pltpu


def _round_up(v, m):
    return (v + m - 1) // m * m


def _basic_block_kernel(x_ref,
                        w1_ref, b1_ref, w2_ref, b2_ref, w3_ref, b3_ref,
                        o_ref, *, N, H, W, ks, negative_slope):
    """x_ref: (Cin_p, N*H*W).  w*_ref: (Cout_p, ks*ks*Cin_p) bf16.  b*_ref: (Cout_p, 1) f32."""
    HW = H * W
    NHW = N * HW
    r = ks // 2

    # ---- Hoisted per-tap boundary masks (computed once, reused by all 3 convs) ----
    # Global flattened index g = n*HW + y*W + x, shape (1, NHW); broadcasts over channels.
    g = jax.lax.broadcasted_iota(jnp.int32, (1, NHW), 1)
    if HW & (HW - 1) == 0:
        p = jnp.bitwise_and(g, HW - 1)              # g % HW  -> local spatial index y*W+x
    else:
        p = jax.lax.rem(g, HW)
    if W & (W - 1) == 0:
        x_idx = jnp.bitwise_and(g, W - 1)           # g % W   -> column index x
    else:
        x_idx = jax.lax.rem(g, W)

    offsets = []    # lane shift for each tap
    masks = []      # (1, NHW) bool validity mask (None for the center tap)
    for dy in range(-r, r + 1):
        for dx in range(-r, r + 1):
            d = dy * W + dx
            conds = []
            if dy < 0:
                conds.append(p >= (-dy) * W)            # y + dy >= 0
            elif dy > 0:
                conds.append(p < (H - dy) * W)          # y + dy <  H
            if dx < 0:
                conds.append(x_idx >= -dx)              # x + dx >= 0
            elif dx > 0:
                conds.append(x_idx <= W - 1 - dx)       # x + dx <  W
            m = None
            for c in conds:
                m = c if m is None else jnp.logical_and(m, c)
            offsets.append(d)
            masks.append(m)

    def conv_lrelu(a_f32, w_ref, b_ref):
        """'Same' ks x ks conv + LeakyReLU.  a_f32: (Cin_p, NHW) f32 -> (Cout_p, NHW) f32."""
        taps = []
        for d, m in zip(offsets, masks):
            # shifted[g] = a[g + d]; any read that would cross an image/row boundary is
            # exactly a masked position, so folding the batch into the lane axis is exact.
            s = pltpu.roll(a_f32, shift=(-d) % NHW, axis=1) if d != 0 else a_f32
            if m is not None:
                s = jnp.where(m, s, 0.0)
            taps.append(s.astype(jnp.bfloat16))      # cast per-tap -> concat moves half the bytes
        # im2col: (ks*ks*Cin_p, NHW) bf16; MXU matmul with f32 accumulation.
        col = jnp.concatenate(taps, axis=0)
        out = jax.lax.dot_general(
            w_ref[...], col,
            dimension_numbers=(((1,), (0,)), ((), ())),
            preferred_element_type=jnp.float32)      # (Cout_p, NHW) f32
        out = out + b_ref[...]                       # bias (Cout_p, 1) broadcast
        return jnp.where(out > 0, out, negative_slope * out)   # LeakyReLU (f32, VPU)

    a = x_ref[...].astype(jnp.float32)               # (Cin_p, NHW)
    a = conv_lrelu(a, w1_ref, b1_ref)
    a = conv_lrelu(a, w2_ref, b2_ref)
    a = conv_lrelu(a, w3_ref, b3_ref)
    o_ref[...] = a.astype(o_ref.dtype)               # lane-dense unmasked vst


def basic_block(x_nchw, params, *, negative_slope=0.01):
    """Fused Basic_Block forward.

    x_nchw : (N, Cin, H, W) float32 (PyTorch NCHW layout).
    params : list of 3 (w, b); w is OIHW (Cout, Cin, ks, ks), b is (Cout,),
             matching nn.Conv2d(..., ks, stride=1, padding=ks//2).
    """
    assert len(params) == 3
    N, Cin, H, W = x_nchw.shape
    HW = H * W
    NHW = N * HW
    assert NHW % 128 == 0, "flattened lane axis must be a multiple of 128"
    ks = params[0][0].shape[-1]
    assert ks % 2 == 1, "odd kernel size expected"

    # Fold batch into the lane axis: (N, Cin, H, W) -> (Cin, N*H*W).
    # Pad channel dims to multiples of 8 (aligned sublane tiles); padded channels stay
    # exactly zero through every layer.
    Cin_p = _round_up(Cin, 8)
    x_folded = jnp.transpose(x_nchw, (1, 0, 2, 3)).reshape(Cin, NHW)
    if Cin_p != Cin:
        x_folded = jnp.pad(x_folded, ((0, Cin_p - Cin), (0, 0)))

    in_specs = [pl.BlockSpec((Cin_p, NHW), lambda i: (0, 0))]
    flat_args = []
    for (w, b) in params:
        Cout_l, Cin_l = w.shape[0], w.shape[1]
        Cout_lp, Cin_lp = _round_up(Cout_l, 8), _round_up(Cin_l, 8)
        w_p = jnp.pad(w, ((0, Cout_lp - Cout_l), (0, Cin_lp - Cin_l), (0, 0), (0, 0)))
        b_p = jnp.pad(b, (0, Cout_lp - Cout_l))
        # OIHW -> (Cout, ky, kx, Cin) -> (Cout, ks*ks*Cin); bf16 for the MXU.
        w_col = jnp.transpose(w_p, (0, 2, 3, 1)).reshape(
            Cout_lp, ks * ks * Cin_lp).astype(jnp.bfloat16)
        b_col = b_p.reshape(Cout_lp, 1).astype(jnp.float32)
        flat_args += [w_col, b_col]
        in_specs += [pl.BlockSpec(w_col.shape, lambda i: (0, 0)),
                     pl.BlockSpec(b_col.shape, lambda i: (0, 0))]

    Cout = params[-1][0].shape[0]
    Cout_p = _round_up(Cout, 8)

    kernel = functools.partial(_basic_block_kernel, N=N, H=H, W=W, ks=ks,
                               negative_slope=negative_slope)
    out = pl.pallas_call(
        kernel,
        out_shape=jax.ShapeDtypeStruct((Cout_p, NHW), jnp.float32),
        grid_spec=pltpu.PrefetchScalarGridSpec(
            num_scalar_prefetch=0,
            grid=(1,),                               # single step: whole batch at once
            in_specs=in_specs,
            out_specs=pl.BlockSpec((Cout_p, NHW), lambda i: (0, 0)),
        ),
        compiler_params=pltpu.CompilerParams(
            dimension_semantics=("arbitrary",),
            vmem_limit_bytes=32 * 1024 * 1024,
        ),
    )(x_folded, *flat_args)

    # (Cout_p, N*HW) -> (N, Cout, H, W)
    return jnp.transpose(out[:Cout].reshape(Cout, N, H, W), (1, 0, 2, 3))


# ---------------- pure-JAX reference (matches the PyTorch module) ----------------
def basic_block_ref(x_nchw, params, *, negative_slope=0.01):
    h = x_nchw
    for (w, b) in params:
        ks = w.shape[-1]
        h = jax.lax.conv_general_dilated(
            h, w, window_strides=(1, 1),
            padding=((ks // 2, ks // 2), (ks // 2, ks // 2)),
            dimension_numbers=('NCHW', 'OIHW', 'NCHW'))
        h = h + b[None, :, None, None]
        h = jnp.where(h > 0, h, negative_slope * h)          # LeakyReLU(0.01)
    return h


if __name__ == "__main__":
    N, Cin, Cout, H, W = 2, 4, 8, 16, 16                     # Basic_Block(4, 8, 3, 1, 1)

    key = jax.random.PRNGKey(0)
    keys = jax.random.split(key, 7)

    params = []
    cin = Cin
    for i in range(3):
        fan_in = cin * 3 * 3
        scale = float(fan_in) ** -0.5
        w = jax.random.uniform(keys[2 * i], (Cout, cin, 3, 3),
                               minval=-scale, maxval=scale, dtype=jnp.float32)
        b = jax.random.uniform(keys[2 * i + 1], (Cout,),
                               minval=-scale, maxval=scale, dtype=jnp.float32)
        params.append((w, b))
        cin = Cout

    x = jax.random.normal(keys[6], (N, Cin, H, W), dtype=jnp.float32)

    out = jax.block_until_ready(basic_block(x, params))
    ref = basic_block_ref(x, params)

    assert out.shape == (N, Cout, H, W)
    # bf16 MXU operands vs. a pure-f32 reference -> modest tolerance.
    max_err = float(jnp.max(jnp.abs(out - ref)))
    assert jnp.allclose(out, ref, rtol=5e-2, atol=5e-2), \
        f"mismatch vs JAX reference (max |err| = {max_err})"
    print("KERNEL_OK")
</pallas_src>

<mosaic_0001>
module attributes {stable_mosaic.version = 11 : i64} {
  func.func @_basic_block_kernel(%arg0: i32, %arg1: memref<8x512xf32, #tpu.memory_space<vmem>>, %arg2: memref<8x72xbf16, #tpu.memory_space<vmem>>, %arg3: memref<8x1xf32, #tpu.memory_space<vmem>>, %arg4: memref<8x72xbf16, #tpu.memory_space<vmem>>, %arg5: memref<8x1xf32, #tpu.memory_space<vmem>>, %arg6: memref<8x72xbf16, #tpu.memory_space<vmem>>, %arg7: memref<8x1xf32, #tpu.memory_space<vmem>>, %arg8: memref<8x512xf32, #tpu.memory_space<vmem>>) attributes {dimension_semantics = [#tpu.dimension_semantics<arbitrary>], iteration_bounds = array<i64: 1>, scalar_prefetch = 0 : i64, scratch_operands = 0 : i64, tpu.core_type = #tpu.core_type<tc>, window_params = [{pipeline_mode = #tpu.pipeline_mode<synchronous>, transform_indices = @transform_0, window_bounds = array<i64: 8, 512>}, {pipeline_mode = #tpu.pipeline_mode<synchronous>, transform_indices = @transform_1, window_bounds = array<i64: 8, 72>}, {pipeline_mode = #tpu.pipeline_mode<synchronous>, transform_indices = @transform_2, window_bounds = array<i64: 8, 1>}, {pipeline_mode = #tpu.pipeline_mode<synchronous>, transform_indices = @transform_3, window_bounds = array<i64: 8, 72>}, {pipeline_mode = #tpu.pipeline_mode<synchronous>, transform_indices = @transform_4, window_bounds = array<i64: 8, 1>}, {pipeline_mode = #tpu.pipeline_mode<synchronous>, transform_indices = @transform_5, window_bounds = array<i64: 8, 72>}, {pipeline_mode = #tpu.pipeline_mode<synchronous>, transform_indices = @transform_6, window_bounds = array<i64: 8, 1>}, {pipeline_mode = #tpu.pipeline_mode<synchronous>, transform_indices = @transform_7, window_bounds = array<i64: 8, 512>}]} {
    %0 = tpu.iota {dimensions = array<i32: 1>} : vector<1x512xi32>
    %c255_i32 = arith.constant 255 : i32
    %1 = vector.broadcast %c255_i32 : i32 to vector<1x512xi32>
    %2 = arith.andi %0, %1 : vector<1x512xi32>
    %c15_i32 = arith.constant 15 : i32
    %3 = vector.broadcast %c15_i32 : i32 to vector<1x512xi32>
    %4 = arith.andi %0, %3 : vector<1x512xi32>
    %c16_i32 = arith.constant 16 : i32
    %5 = vector.broadcast %c16_i32 : i32 to vector<1x512xi32>
    %6 = arith.cmpi sge, %2, %5 : vector<1x512xi32>
    %c1_i32 = arith.constant 1 : i32
    %7 = vector.broadcast %c1_i32 : i32 to vector<1x512xi32>
    %8 = arith.cmpi sge, %4, %7 : vector<1x512xi32>
    %9 = arith.andi %6, %8 : vector<1x512xi1>
    %c16_i32_0 = arith.constant 16 : i32
    %10 = vector.broadcast %c16_i32_0 : i32 to vector<1x512xi32>
    %11 = arith.cmpi sge, %2, %10 : vector<1x512xi32>
    %c16_i32_1 = arith.constant 16 : i32
    %12 = vector.broadcast %c16_i32_1 : i32 to vector<1x512xi32>
    %13 = arith.cmpi sge, %2, %12 : vector<1x512xi32>
    %c14_i32 = arith.constant 14 : i32
    %14 = vector.broadcast %c14_i32 : i32 to vector<1x512xi32>
    %15 = arith.cmpi sle, %4, %14 : vector<1x512xi32>
    %16 = arith.andi %13, %15 : vector<1x512xi1>
    %c1_i32_2 = arith.constant 1 : i32
    %17 = vector.broadcast %c1_i32_2 : i32 to vector<1x512xi32>
    %18 = arith.cmpi sge, %4, %17 : vector<1x512xi32>
    %c14_i32_3 = arith.constant 14 : i32
    %19 = vector.broadcast %c14_i32_3 : i32 to vector<1x512xi32>
    %20 = arith.cmpi sle, %4, %19 : vector<1x512xi32>
    %c240_i32 = arith.constant 240 : i32
    %21 = vector.broadcast %c240_i32 : i32 to vector<1x512xi32>
    %22 = arith.cmpi slt, %2, %21 : vector<1x512xi32>
    %c1_i32_4 = arith.constant 1 : i32
    %23 = vector.broadcast %c1_i32_4 : i32 to vector<1x512xi32>
    %24 = arith.cmpi sge, %4, %23 : vector<1x512xi32>
    %25 = arith.andi %22, %24 : vector<1x512xi1>
    %c240_i32_5 = arith.constant 240 : i32
    %26 = vector.broadcast %c240_i32_5 : i32 to vector<1x512xi32>
    %27 = arith.cmpi slt, %2, %26 : vector<1x512xi32>
    %c240_i32_6 = arith.constant 240 : i32
    %28 = vector.broadcast %c240_i32_6 : i32 to vector<1x512xi32>
    %29 = arith.cmpi slt, %2, %28 : vector<1x512xi32>
    %c14_i32_7 = arith.constant 14 : i32
    %30 = vector.broadcast %c14_i32_7 : i32 to vector<1x512xi32>
    %31 = arith.cmpi sle, %4, %30 : vector<1x512xi32>
    %32 = arith.andi %29, %31 : vector<1x512xi1>
    %c0 = arith.constant 0 : index
    %c0_8 = arith.constant 0 : index
    %33 = vector.load %arg1[%c0, %c0_8] : memref<8x512xf32, #tpu.memory_space<vmem>>, vector<8x512xf32>
    %c17_i32 = arith.constant 17 : i32
    %34 = tpu.dynamic_rotate %33 by %c17_i32 dim 1 : vector<8x512xf32>, i32 -> vector<8x512xf32>
    %cst = arith.constant 0.000000e+00 : f32
    %35 = vector.shape_cast %9 : vector<1x512xi1> to vector<1x512xi1>
    %36 = vector.broadcast %35 : vector<1x512xi1> to vector<8x512xi1>
    %37 = vector.broadcast %cst : f32 to vector<8x512xf32>
    %38 = arith.select %36, %34, %37 : vector<8x512xi1>, vector<8x512xf32>
    %39 = arith.truncf %38 : vector<8x512xf32> to vector<8x512xbf16>
    %c16_i32_9 = arith.constant 16 : i32
    %40 = tpu.dynamic_rotate %33 by %c16_i32_9 dim 1 : vector<8x512xf32>, i32 -> vector<8x512xf32>
    %cst_10 = arith.constant 0.000000e+00 : f32
    %41 = vector.shape_cast %11 : vector<1x512xi1> to vector<1x512xi1>
    %42 = vector.broadcast %41 : vector<1x512xi1> to vector<8x512xi1>
    %43 = vector.broadcast %cst_10 : f32 to vector<8x512xf32>
    %44 = arith.select %42, %40, %43 : vector<8x512xi1>, vector<8x512xf32>
    %45 = arith.truncf %44 : vector<8x512xf32> to vector<8x512xbf16>
    %c15_i32_11 = arith.constant 15 : i32
    %46 = tpu.dynamic_rotate %33 by %c15_i32_11 dim 1 : vector<8x512xf32>, i32 -> vector<8x512xf32>
    %cst_12 = arith.constant 0.000000e+00 : f32
    %47 = vector.shape_cast %16 : vector<1x512xi1> to vector<1x512xi1>
    %48 = vector.broadcast %47 : vector<1x512xi1> to vector<8x512xi1>
    %49 = vector.broadcast %cst_12 : f32 to vector<8x512xf32>
    %50 = arith.select %48, %46, %49 : vector<8x512xi1>, vector<8x512xf32>
    %51 = arith.truncf %50 : vector<8x512xf32> to vector<8x512xbf16>
    %c1_i32_13 = arith.constant 1 : i32
    %52 = tpu.dynamic_rotate %33 by %c1_i32_13 dim 1 : vector<8x512xf32>, i32 -> vector<8x512xf32>
    %cst_14 = arith.constant 0.000000e+00 : f32
    %53 = vector.shape_cast %18 : vector<1x512xi1> to vector<1x512xi1>
    %54 = vector.broadcast %53 : vector<1x512xi1> to vector<8x512xi1>
    %55 = vector.broadcast %cst_14 : f32 to vector<8x512xf32>
    %56 = arith.select %54, %52, %55 : vector<8x512xi1>, vector<8x512xf32>
    %57 = arith.truncf %56 : vector<8x512xf32> to vector<8x512xbf16>
    %58 = arith.truncf %33 : vector<8x512xf32> to vector<8x512xbf16>
    %c511_i32 = arith.constant 511 : i32
    %59 = tpu.dynamic_rotate %33 by %c511_i32 dim 1 : vector<8x512xf32>, i32 -> vector<8x512xf32>
    %cst_15 = arith.constant 0.000000e+00 : f32
    %60 = vector.shape_cast %20 : vector<1x512xi1> to vector<1x512xi1>
    %61 = vector.broadcast %60 : vector<1x512xi1> to vector<8x512xi1>
    %62 = vector.broadcast %cst_15 : f32 to vector<8x512xf32>
    %63 = arith.select %61, %59, %62 : vector<8x512xi1>, vector<8x512xf32>
    %64 = arith.truncf %63 : vector<8x512xf32> to vector<8x512xbf16>
    %c497_i32 = arith.constant 497 : i32
    %65 = tpu.dynamic_rotate %33 by %c497_i32 dim 1 : vector<8x512xf32>, i32 -> vector<8x512xf32>
    %cst_16 = arith.constant 0.000000e+00 : f32
    %66 = vector.shape_cast %25 : vector<1x512xi1> to vector<1x512xi1>
    %67 = vector.broadcast %66 : vector<1x512xi1> to vector<8x512xi1>
    %68 = vector.broadcast %cst_16 : f32 to vector<8x512xf32>
    %69 = arith.select %67, %65, %68 : vector<8x512xi1>, vector<8x512xf32>
    %70 = arith.truncf %69 : vector<8x512xf32> to vector<8x512xbf16>
    %c496_i32 = arith.constant 496 : i32
    %71 = tpu.dynamic_rotate %33 by %c496_i32 dim 1 : vector<8x512xf32>, i32 -> vector<8x512xf32>
    %cst_17 = arith.constant 0.000000e+00 : f32
    %72 = vector.shape_cast %27 : vector<1x512xi1> to vector<1x512xi1>
    %73 = vector.broadcast %72 : vector<1x512xi1> to vector<8x512xi1>
    %74 = vector.broadcast %cst_17 : f32 to vector<8x512xf32>
    %75 = arith.select %73, %71, %74 : vector<8x512xi1>, vector<8x512xf32>
    %76 = arith.truncf %75 : vector<8x512xf32> to vector<8x512xbf16>
    %c495_i32 = arith.constant 495 : i32
    %77 = tpu.dynamic_rotate %33 by %c495_i32 dim 1 : vector<8x512xf32>, i32 -> vector<8x512xf32>
    %cst_18 = arith.constant 0.000000e+00 : f32
    %78 = vector.shape_cast %32 : vector<1x512xi1> to vector<1x512xi1>
    %79 = vector.broadcast %78 : vector<1x512xi1> to vector<8x512xi1>
    %80 = vector.broadcast %cst_18 : f32 to vector<8x512xf32>
    %81 = arith.select %79, %77, %80 : vector<8x512xi1>, vector<8x512xf32>
    %82 = arith.truncf %81 : vector<8x512xf32> to vector<8x512xbf16>
    %83 = tpu.concatenate %39, %45, %51, %57, %58, %64, %70, %76, %82 in 0 : vector<8x512xbf16>, vector<8x512xbf16>, vector<8x512xbf16>, vector<8x512xbf16>, vector<8x512xbf16>, vector<8x512xbf16>, vector<8x512xbf16>, vector<8x512xbf16>, vector<8x512xbf16> -> vector<72x512xbf16>
    %c0_19 = arith.constant 0 : index
    %c0_20 = arith.constant 0 : index
    %84 = vector.load %arg2[%c0_19, %c0_20] : memref<8x72xbf16, #tpu.memory_space<vmem>>, vector<8x72xbf16>
    %cst_21 = arith.constant dense<0.000000e+00> : vector<8x512xf32>
    %85 = tpu.matmul %84, %83, %cst_21 {dimension_numbers = #tpu.dot_dimension_numbers<[1], [0], [0], [1], [0, 0, 1, 1], [], []>} : vector<8x72xbf16>, vector<72x512xbf16>, vector<8x512xf32> -> vector<8x512xf32>
    %c0_22 = arith.constant 0 : index
    %c0_23 = arith.constant 0 : index
    %86 = vector.load %arg3[%c0_22, %c0_23] : memref<8x1xf32, #tpu.memory_space<vmem>>, vector<8x1xf32>
    %87 = vector.broadcast %86 : vector<8x1xf32> to vector<8x512xf32>
    %88 = arith.addf %85, %87 : vector<8x512xf32>
    %cst_24 = arith.constant 0.000000e+00 : f32
    %89 = vector.broadcast %cst_24 : f32 to vector<8x512xf32>
    %90 = arith.cmpf ogt, %88, %89 : vector<8x512xf32>
    %cst_25 = arith.constant 0.00999999977 : f32
    %91 = vector.broadcast %cst_25 : f32 to vector<8x512xf32>
    %92 = arith.mulf %91, %88 : vector<8x512xf32>
    %93 = arith.select %90, %88, %92 : vector<8x512xi1>, vector<8x512xf32>
    %c17_i32_26 = arith.constant 17 : i32
    %94 = tpu.dynamic_rotate %93 by %c17_i32_26 dim 1 : vector<8x512xf32>, i32 -> vector<8x512xf32>
    %cst_27 = arith.constant 0.000000e+00 : f32
    %95 = vector.shape_cast %9 : vector<1x512xi1> to vector<1x512xi1>
    %96 = vector.broadcast %95 : vector<1x512xi1> to vector<8x512xi1>
    %97 = vector.broadcast %cst_27 : f32 to vector<8x512xf32>
    %98 = arith.select %96, %94, %97 : vector<8x512xi1>, vector<8x512xf32>
    %99 = arith.truncf %98 : vector<8x512xf32> to vector<8x512xbf16>
    %c16_i32_28 = arith.constant 16 : i32
    %100 = tpu.dynamic_rotate %93 by %c16_i32_28 dim 1 : vector<8x512xf32>, i32 -> vector<8x512xf32>
    %cst_29 = arith.constant 0.000000e+00 : f32
    %101 = vector.shape_cast %11 : vector<1x512xi1> to vector<1x512xi1>
    %102 = vector.broadcast %101 : vector<1x512xi1> to vector<8x512xi1>
    %103 = vector.broadcast %cst_29 : f32 to vector<8x512xf32>
    %104 = arith.select %102, %100, %103 : vector<8x512xi1>, vector<8x512xf32>
    %105 = arith.truncf %104 : vector<8x512xf32> to vector<8x512xbf16>
    %c15_i32_30 = arith.constant 15 : i32
    %106 = tpu.dynamic_rotate %93 by %c15_i32_30 dim 1 : vector<8x512xf32>, i32 -> vector<8x512xf32>
    %cst_31 = arith.constant 0.000000e+00 : f32
    %107 = vector.shape_cast %16 : vector<1x512xi1> to vector<1x512xi1>
    %108 = vector.broadcast %107 : vector<1x512xi1> to vector<8x512xi1>
    %109 = vector.broadcast %cst_31 : f32 to vector<8x512xf32>
    %110 = arith.select %108, %106, %109 : vector<8x512xi1>, vector<8x512xf32>
    %111 = arith.truncf %110 : vector<8x512xf32> to vector<8x512xbf16>
    %c1_i32_32 = arith.constant 1 : i32
    %112 = tpu.dynamic_rotate %93 by %c1_i32_32 dim 1 : vector<8x512xf32>, i32 -> vector<8x512xf32>
    %cst_33 = arith.constant 0.000000e+00 : f32
    %113 = vector.shape_cast %18 : vector<1x512xi1> to vector<1x512xi1>
    %114 = vector.broadcast %113 : vector<1x512xi1> to vector<8x512xi1>
    %115 = vector.broadcast %cst_33 : f32 to vector<8x512xf32>
    %116 = arith.select %114, %112, %115 : vector<8x512xi1>, vector<8x512xf32>
    %117 = arith.truncf %116 : vector<8x512xf32> to vector<8x512xbf16>
    %118 = arith.truncf %93 : vector<8x512xf32> to vector<8x512xbf16>
    %c511_i32_34 = arith.constant 511 : i32
    %119 = tpu.dynamic_rotate %93 by %c511_i32_34 dim 1 : vector<8x512xf32>, i32 -> vector<8x512xf32>
    %cst_35 = arith.constant 0.000000e+00 : f32
    %120 = vector.shape_cast %20 : vector<1x512xi1> to vector<1x512xi1>
    %121 = vector.broadcast %120 : vector<1x512xi1> to vector<8x512xi1>
    %122 = vector.broadcast %cst_35 : f32 to vector<8x512xf32>
    %123 = arith.select %121, %119, %122 : vector<8x512xi1>, vector<8x512xf32>
    %124 = arith.truncf %123 : vector<8x512xf32> to vector<8x512xbf16>
    %c497_i32_36 = arith.constant 497 : i32
    %125 = tpu.dynamic_rotate %93 by %c497_i32_36 dim 1 : vector<8x512xf32>, i32 -> vector<8x512xf32>
    %cst_37 = arith.constant 0.000000e+00 : f32
    %126 = vector.shape_cast %25 : vector<1x512xi1> to vector<1x512xi1>
    %127 = vector.broadcast %126 : vector<1x512xi1> to vector<8x512xi1>
    %128 = vector.broadcast %cst_37 : f32 to vector<8x512xf32>
    %129 = arith.select %127, %125, %128 : vector<8x512xi1>, vector<8x512xf32>
    %130 = arith.truncf %129 : vector<8x512xf32> to vector<8x512xbf16>
    %c496_i32_38 = arith.constant 496 : i32
    %131 = tpu.dynamic_rotate %93 by %c496_i32_38 dim 1 : vector<8x512xf32>, i32 -> vector<8x512xf32>
    %cst_39 = arith.constant 0.000000e+00 : f32
    %132 = vector.shape_cast %27 : vector<1x512xi1> to vector<1x512xi1>
    %133 = vector.broadcast %132 : vector<1x512xi1> to vector<8x512xi1>
    %134 = vector.broadcast %cst_39 : f32 to vector<8x512xf32>
    %135 = arith.select %133, %131, %134 : vector<8x512xi1>, vector<8x512xf32>
    %136 = arith.truncf %135 : vector<8x512xf32> to vector<8x512xbf16>
    %c495_i32_40 = arith.constant 495 : i32
    %137 = tpu.dynamic_rotate %93 by %c495_i32_40 dim 1 : vector<8x512xf32>, i32 -> vector<8x512xf32>
    %cst_41 = arith.constant 0.000000e+00 : f32
    %138 = vector.shape_cast %32 : vector<1x512xi1> to vector<1x512xi1>
    %139 = vector.broadcast %138 : vector<1x512xi1> to vector<8x512xi1>
    %140 = vector.broadcast %cst_41 : f32 to vector<8x512xf32>
    %141 = arith.select %139, %137, %140 : vector<8x512xi1>, vector<8x512xf32>
    %142 = arith.truncf %141 : vector<8x512xf32> to vector<8x512xbf16>
    %143 = tpu.concatenate %99, %105, %111, %117, %118, %124, %130, %136, %142 in 0 : vector<8x512xbf16>, vector<8x512xbf16>, vector<8x512xbf16>, vector<8x512xbf16>, vector<8x512xbf16>, vector<8x512xbf16>, vector<8x512xbf16>, vector<8x512xbf16>, vector<8x512xbf16> -> vector<72x512xbf16>
    %c0_42 = arith.constant 0 : index
    %c0_43 = arith.constant 0 : index
    %144 = vector.load %arg4[%c0_42, %c0_43] : memref<8x72xbf16, #tpu.memory_space<vmem>>, vector<8x72xbf16>
    %cst_44 = arith.constant dense<0.000000e+00> : vector<8x512xf32>
    %145 = tpu.matmul %144, %143, %cst_44 {dimension_numbers = #tpu.dot_dimension_numbers<[1], [0], [0], [1], [0, 0, 1, 1], [], []>} : vector<8x72xbf16>, vector<72x512xbf16>, vector<8x512xf32> -> vector<8x512xf32>
    %c0_45 = arith.constant 0 : index
    %c0_46 = arith.constant 0 : index
    %146 = vector.load %arg5[%c0_45, %c0_46] : memref<8x1xf32, #tpu.memory_space<vmem>>, vector<8x1xf32>
    %147 = vector.broadcast %146 : vector<8x1xf32> to vector<8x512xf32>
    %148 = arith.addf %145, %147 : vector<8x512xf32>
    %cst_47 = arith.constant 0.000000e+00 : f32
    %149 = vector.broadcast %cst_47 : f32 to vector<8x512xf32>
    %150 = arith.cmpf ogt, %148, %149 : vector<8x512xf32>
    %cst_48 = arith.constant 0.00999999977 : f32
    %151 = vector.broadcast %cst_48 : f32 to vector<8x512xf32>
    %152 = arith.mulf %151, %148 : vector<8x512xf32>
    %153 = arith.select %150, %148, %152 : vector<8x512xi1>, vector<8x512xf32>
    %c17_i32_49 = arith.constant 17 : i32
    %154 = tpu.dynamic_rotate %153 by %c17_i32_49 dim 1 : vector<8x512xf32>, i32 -> vector<8x512xf32>
    %cst_50 = arith.constant 0.000000e+00 : f32
    %155 = vector.shape_cast %9 : vector<1x512xi1> to vector<1x512xi1>
    %156 = vector.broadcast %155 : vector<1x512xi1> to vector<8x512xi1>
    %157 = vector.broadcast %cst_50 : f32 to vector<8x512xf32>
    %158 = arith.select %156, %154, %157 : vector<8x512xi1>, vector<8x512xf32>
    %159 = arith.truncf %158 : vector<8x512xf32> to vector<8x512xbf16>
    %c16_i32_51 = arith.constant 16 : i32
    %160 = tpu.dynamic_rotate %153 by %c16_i32_51 dim 1 : vector<8x512xf32>, i32 -> vector<8x512xf32>
    %cst_52 = arith.constant 0.000000e+00 : f32
    %161 = vector.shape_cast %11 : vector<1x512xi1> to vector<1x512xi1>
    %162 = vector.broadcast %161 : vector<1x512xi1> to vector<8x512xi1>
    %163 = vector.broadcast %cst_52 : f32 to vector<8x512xf32>
    %164 = arith.select %162, %160, %163 : vector<8x512xi1>, vector<8x512xf32>
    %165 = arith.truncf %164 : vector<8x512xf32> to vector<8x512xbf16>
    %c15_i32_53 = arith.constant 15 : i32
    %166 = tpu.dynamic_rotate %153 by %c15_i32_53 dim 1 : vector<8x512xf32>, i32 -> vector<8x512xf32>
    %cst_54 = arith.constant 0.000000e+00 : f32
    %167 = vector.shape_cast %16 : vector<1x512xi1> to vector<1x512xi1>
    %168 = vector.broadcast %167 : vector<1x512xi1> to vector<8x512xi1>
    %169 = vector.broadcast %cst_54 : f32 to vector<8x512xf32>
    %170 = arith.select %168, %166, %169 : vector<8x512xi1>, vector<8x512xf32>
    %171 = arith.truncf %170 : vector<8x512xf32> to vector<8x512xbf16>
    %c1_i32_55 = arith.constant 1 : i32
    %172 = tpu.dynamic_rotate %153 by %c1_i32_55 dim 1 : vector<8x512xf32>, i32 -> vector<8x512xf32>
    %cst_56 = arith.constant 0.000000e+00 : f32
    %173 = vector.shape_cast %18 : vector<1x512xi1> to vector<1x512xi1>
    %174 = vector.broadcast %173 : vector<1x512xi1> to vector<8x512xi1>
    %175 = vector.broadcast %cst_56 : f32 to vector<8x512xf32>
    %176 = arith.select %174, %172, %175 : vector<8x512xi1>, vector<8x512xf32>
    %177 = arith.truncf %176 : vector<8x512xf32> to vector<8x512xbf16>
    %178 = arith.truncf %153 : vector<8x512xf32> to vector<8x512xbf16>
    %c511_i32_57 = arith.constant 511 : i32
    %179 = tpu.dynamic_rotate %153 by %c511_i32_57 dim 1 : vector<8x512xf32>, i32 -> vector<8x512xf32>
    %cst_58 = arith.constant 0.000000e+00 : f32
    %180 = vector.shape_cast %20 : vector<1x512xi1> to vector<1x512xi1>
    %181 = vector.broadcast %180 : vector<1x512xi1> to vector<8x512xi1>
    %182 = vector.broadcast %cst_58 : f32 to vector<8x512xf32>
    %183 = arith.select %181, %179, %182 : vector<8x512xi1>, vector<8x512xf32>
    %184 = arith.truncf %183 : vector<8x512xf32> to vector<8x512xbf16>
    %c497_i32_59 = arith.constant 497 : i32
    %185 = tpu.dynamic_rotate %153 by %c497_i32_59 dim 1 : vector<8x512xf32>, i32 -> vector<8x512xf32>
    %cst_60 = arith.constant 0.000000e+00 : f32
    %186 = vector.shape_cast %25 : vector<1x512xi1> to vector<1x512xi1>
    %187 = vector.broadcast %186 : vector<1x512xi1> to vector<8x512xi1>
    %188 = vector.broadcast %cst_60 : f32 to vector<8x512xf32>
    %189 = arith.select %187, %185, %188 : vector<8x512xi1>, vector<8x512xf32>
    %190 = arith.truncf %189 : vector<8x512xf32> to vector<8x512xbf16>
    %c496_i32_61 = arith.constant 496 : i32
    %191 = tpu.dynamic_rotate %153 by %c496_i32_61 dim 1 : vector<8x512xf32>, i32 -> vector<8x512xf32>
    %cst_62 = arith.constant 0.000000e+00 : f32
    %192 = vector.shape_cast %27 : vector<1x512xi1> to vector<1x512xi1>
    %193 = vector.broadcast %192 : vector<1x512xi1> to vector<8x512xi1>
    %194 = vector.broadcast %cst_62 : f32 to vector<8x512xf32>
    %195 = arith.select %193, %191, %194 : vector<8x512xi1>, vector<8x512xf32>
    %196 = arith.truncf %195 : vector<8x512xf32> to vector<8x512xbf16>
    %c495_i32_63 = arith.constant 495 : i32
    %197 = tpu.dynamic_rotate %153 by %c495_i32_63 dim 1 : vector<8x512xf32>, i32 -> vector<8x512xf32>
    %cst_64 = arith.constant 0.000000e+00 : f32
    %198 = vector.shape_cast %32 : vector<1x512xi1> to vector<1x512xi1>
    %199 = vector.broadcast %198 : vector<1x512xi1> to vector<8x512xi1>
    %200 = vector.broadcast %cst_64 : f32 to vector<8x512xf32>
    %201 = arith.select %199, %197, %200 : vector<8x512xi1>, vector<8x512xf32>
    %202 = arith.truncf %201 : vector<8x512xf32> to vector<8x512xbf16>
    %203 = tpu.concatenate %159, %165, %171, %177, %178, %184, %190, %196, %202 in 0 : vector<8x512xbf16>, vector<8x512xbf16>, vector<8x512xbf16>, vector<8x512xbf16>, vector<8x512xbf16>, vector<8x512xbf16>, vector<8x512xbf16>, vector<8x512xbf16>, vector<8x512xbf16> -> vector<72x512xbf16>
    %c0_65 = arith.constant 0 : index
    %c0_66 = arith.constant 0 : index
    %204 = vector.load %arg6[%c0_65, %c0_66] : memref<8x72xbf16, #tpu.memory_space<vmem>>, vector<8x72xbf16>
    %cst_67 = arith.constant dense<0.000000e+00> : vector<8x512xf32>
    %205 = tpu.matmul %204, %203, %cst_67 {dimension_numbers = #tpu.dot_dimension_numbers<[1], [0], [0], [1], [0, 0, 1, 1], [], []>} : vector<8x72xbf16>, vector<72x512xbf16>, vector<8x512xf32> -> vector<8x512xf32>
    %c0_68 = arith.constant 0 : index
    %c0_69 = arith.constant 0 : index
    %206 = vector.load %arg7[%c0_68, %c0_69] : memref<8x1xf32, #tpu.memory_space<vmem>>, vector<8x1xf32>
    %207 = vector.broadcast %206 : vector<8x1xf32> to vector<8x512xf32>
    %208 = arith.addf %205, %207 : vector<8x512xf32>
    %cst_70 = arith.constant 0.000000e+00 : f32
    %209 = vector.broadcast %cst_70 : f32 to vector<8x512xf32>
    %210 = arith.cmpf ogt, %208, %209 : vector<8x512xf32>
    %cst_71 = arith.constant 0.00999999977 : f32
    %211 = vector.broadcast %cst_71 : f32 to vector<8x512xf32>
    %212 = arith.mulf %211, %208 : vector<8x512xf32>
    %213 = arith.select %210, %208, %212 : vector<8x512xi1>, vector<8x512xf32>
    %c0_72 = arith.constant 0 : index
    %c0_73 = arith.constant 0 : index
    %214 = vector.load %arg8[%c0_72, %c0_73] : memref<8x512xf32, #tpu.memory_space<vmem>>, vector<8x512xf32>
    tpu.vector_store %arg8[%c0_72, %c0_73], %213 {strides = array<i32>} : memref<8x512xf32, #tpu.memory_space<vmem>>, vector<8x512xf32>,
    return
  }
  func.func @transform_0(%arg0: i32) -> (i32, i32) {
    %c0_i32 = arith.constant 0 : i32
    %c0_i32_0 = arith.constant 0 : i32
    %c0_i32_1 = arith.constant 0 : i32
    return %c0_i32, %c0_i32_0 : i32, i32
  }
  func.func @transform_1(%arg0: i32) -> (i32, i32) {
    %c0_i32 = arith.constant 0 : i32
    %c0_i32_0 = arith.constant 0 : i32
    %c0_i32_1 = arith.constant 0 : i32
    return %c0_i32, %c0_i32_0 : i32, i32
  }
  func.func @transform_2(%arg0: i32) -> (i32, i32) {
    %c0_i32 = arith.constant 0 : i32
    %c0_i32_0 = arith.constant 0 : i32
    %c0_i32_1 = arith.constant 0 : i32
    return %c0_i32, %c0_i32_0 : i32, i32
  }
  func.func @transform_3(%arg0: i32) -> (i32, i32) {
    %c0_i32 = arith.constant 0 : i32
    %c0_i32_0 = arith.constant 0 : i32
    %c0_i32_1 = arith.constant 0 : i32
    return %c0_i32, %c0_i32_0 : i32, i32
  }
  func.func @transform_4(%arg0: i32) -> (i32, i32) {
    %c0_i32 = arith.constant 0 : i32
    %c0_i32_0 = arith.constant 0 : i32
    %c0_i32_1 = arith.constant 0 : i32
    return %c0_i32, %c0_i32_0 : i32, i32
  }
  func.func @transform_5(%arg0: i32) -> (i32, i32) {
    %c0_i32 = arith.constant 0 : i32
    %c0_i32_0 = arith.constant 0 : i32
    %c0_i32_1 = arith.constant 0 : i32
    return %c0_i32, %c0_i32_0 : i32, i32
  }
  func.func @transform_6(%arg0: i32) -> (i32, i32) {
    %c0_i32 = arith.constant 0 : i32
    %c0_i32_0 = arith.constant 0 : i32
    %c0_i32_1 = arith.constant 0 : i32
    return %c0_i32, %c0_i32_0 : i32, i32
  }
  func.func @transform_7(%arg0: i32) -> (i32, i32) {
    %c0_i32 = arith.constant 0 : i32
    %c0_i32_0 = arith.constant 0 : i32
    %c0_i32_1 = arith.constant 0 : i32
    return %c0_i32, %c0_i32_0 : i32, i32
  }
}

</mosaic_0001>

<llo_original>
// kernel: tpu_custom_call.1
$region0: #{tpu_custom_call.1}
  #allocation0 [shape = 'u32[]', space=smem, size = 0x4, offset = 0x4, fixed_abs, tag = 'smem constant byte address 0x4 - core index']
  #allocation1 [shape = 'u32[72,128]{1,0:T(1,128)}', space=vmem, size = 0x9000, scoped, tag = 'internal scratch']
  %s0 = inlined_call_operand.hbm [shape: f32[8,512], index: 0, kind: input, shape index: {}]
  %s1 = inlined_call_operand.vmem [shape: bf16[8,72], index: 1, kind: input, shape index: {}]
  %s2 = inlined_call_operand.vmem [shape: f32[8,1], index: 2, kind: input, shape index: {}]
  %s3 = inlined_call_operand.vmem [shape: bf16[8,72], index: 3, kind: input, shape index: {}]
  %s4 = inlined_call_operand.vmem [shape: f32[8,1], index: 4, kind: input, shape index: {}]
  %s5 = inlined_call_operand.vmem [shape: bf16[8,72], index: 5, kind: input, shape index: {}]
  %s6 = inlined_call_operand.vmem [shape: f32[8,1], index: 6, kind: input, shape index: {}]
  %s7 = inlined_call_operand.hbm [shape: f32[8,512], index: 7, kind: output, shape index: {}]
  %s8 = sld [smem:[#allocation0]]
  $region42: #{tpu_custom_call.1} parent=0
    _
  %s10 = ssub.s32 1, %s8
  %s11 = scalar_select 0, %s10, %s8
  $region1: #{tpu_custom_call.1} parent=0
    #allocation2 [shape = 'u8[16384]{0}', space=vmem, size = 0x4000, scoped, tag = 'input window, operand 0, single buffered']
    #allocation3 [shape = 's32[1]{0}', space=sflag, size = 0x4, scoped, tag = 'scoped memory for tpu_custom_call.1']
    #allocation4 [shape = 's32[1]{0}', space=sflag, size = 0x4, scoped, tag = 'scoped memory for tpu_custom_call.1']
    #allocation5 [shape = 'u8[16384]{0}', space=vmem, size = 0x4000, scoped, tag = 'output window, operand 0, single buffered']
    %12 = vsyncpa [#allocation3], 0
    %13 = vsyncpa [#allocation4], 0
    // Predicated region
    $region2: #{tpu_custom_call.1} parent=1 // pred_check
      _
    $region3: #{tpu_custom_call.1} parent=1 // pred_check_branch
      %15 = sbr.rel (0) target = $region5
    $region4: #{tpu_custom_call.1} parent=1 // pred_region
      %17 = vsyncadd [#allocation3], 0
      %s19 = sshll.u32 %s0, 4
      %s20 = int_to_ptr.hbm [resolvable:$true] %s19
      %s21 = sshll.u32 [#allocation2], 4
      %s22 = int_to_ptr.vmem [resolvable:$true] %s21
      %24 = dma.hbm_to_vmem [thread:$0]  %s20, 512, %s22, [#allocation3]
    $region5: #{tpu_custom_call.1} parent=1 // pred_fallthru
      _
    // Predicated region
    $region6: #{tpu_custom_call.1} parent=1 // pred_check
      _
    $region7: #{tpu_custom_call.1} parent=1 // pred_check_branch
      %26 = sbr.rel (0) target = $region9
    $region8: #{tpu_custom_call.1} parent=1 // pred_region
      _
    $region9: #{tpu_custom_call.1} parent=1 // pred_fallthru
      _
    // Predicated region
    $region10: #{tpu_custom_call.1} parent=1 // pred_check
      _
    $region11: #{tpu_custom_call.1} parent=1 // pred_check_branch
      %28 = sbr.rel (0) target = $region13
    $region12: #{tpu_custom_call.1} parent=1 // pred_region
      _
    $region13: #{tpu_custom_call.1} parent=1 // pred_fallthru
      _
    // Predicated region
    $region14: #{tpu_custom_call.1} parent=1 // pred_check
      _
    $region15: #{tpu_custom_call.1} parent=1 // pred_check_branch
      %30 = sbr.rel (0) target = $region17
    $region16: #{tpu_custom_call.1} parent=1 // pred_region
      _
    $region17: #{tpu_custom_call.1} parent=1 // pred_fallthru
      _
    // Predicated region
    $region18: #{tpu_custom_call.1} parent=1 // pred_check
      _
    $region19: #{tpu_custom_call.1} parent=1 // pred_check_branch
      %32 = sbr.rel (0) target = $region21
    $region20: #{tpu_custom_call.1} parent=1 // pred_region
      _
    $region21: #{tpu_custom_call.1} parent=1 // pred_fallthru
      _
    // Predicated region
    $region22: #{tpu_custom_call.1} parent=1 // pred_check
      _
    $region23: #{tpu_custom_call.1} parent=1 // pred_check_branch
      %34 = sbr.rel (0) target = $region25
    $region24: #{tpu_custom_call.1} parent=1 // pred_region
      _
    $region25: #{tpu_custom_call.1} parent=1 // pred_fallthru
      _
    // Predicated region
    $region26: #{tpu_custom_call.1} parent=1 // pred_check
      _
    $region27: #{tpu_custom_call.1} parent=1 // pred_check_branch
      %36 = sbr.rel (0) target = $region29
    $region28: #{tpu_custom_call.1} parent=1 // pred_region
      _
    $region29: #{tpu_custom_call.1} parent=1 // pred_fallthru
      _
    // Predicated region
    $region30: #{tpu_custom_call.1} parent=1 // pred_check
      _
    $region31: #{tpu_custom_call.1} parent=1 // pred_check_branch
      %38 = sbr.rel (0) target = $region33
    $region32: #{tpu_custom_call.1} parent=1 // pred_region
      %40 = dma.done [#allocation3], 512
    $region33: #{tpu_custom_call.1} parent=1 // pred_fallthru
      _
    %v42 = vlaneseq
    %v43 = vand.u32 %v42, 127
    %v44 = vadd.s32 %v43, 128
    %v45 = vadd.s32 %v43, 256
    %v46 = vadd.s32 %v43, 384
    %v47 = vand.u32 %v43, 255
    %v48 = vand.u32 %v44, 255
    %v49 = vand.u32 %v45, 255
    %v50 = vand.u32 %v46, 255
    %v51 = vand.u32 %v43, 15
    %v52 = vand.u32 %v44, 15
    %v53 = vand.u32 %v45, 15
    %v54 = vand.u32 %v46, 15
    %vm55 = vcmp.ge.s32.totalorder %v47, 16
    %vm56 = vcmp.ge.s32.totalorder %v48, 16
    %vm57 = vcmp.ge.s32.totalorder %v49, 16
    %vm58 = vcmp.ge.s32.totalorder %v50, 16
    %vm59 = vcmp.ge.s32.totalorder %v51, 1
    %vm60 = vcmp.ge.s32.totalorder %v52, 1
    %vm61 = vcmp.ge.s32.totalorder %v53, 1
    %vm62 = vcmp.ge.s32.totalorder %v54, 1
    %vm63 = vmand %vm55, %vm59
    %vm64 = vmand %vm56, %vm60
    %vm65 = vmand %vm57, %vm61
    %vm66 = vmand %vm58, %vm62
    %vm67 = vcmp.le.s32.totalorder %v51, 14
    %vm68 = vcmp.le.s32.totalorder %v52, 14
    %vm69 = vcmp.le.s32.totalorder %v53, 14
    %vm70 = vcmp.le.s32.totalorder %v54, 14
    %vm71 = vmand %vm55, %vm67
    %vm72 = vmand %vm56, %vm68
    %vm73 = vmand %vm57, %vm69
    %vm74 = vmand %vm58, %vm70
    %vm75 = vcmp.lt.s32.totalorder %v47, 240
    %vm76 = vcmp.lt.s32.totalorder %v48, 240
    %vm77 = vcmp.lt.s32.totalorder %v49, 240
    %vm78 = vcmp.lt.s32.totalorder %v50, 240
    %vm79 = vmand %vm75, %vm59
    %vm80 = vmand %vm76, %vm60
    %vm81 = vmand %vm77, %vm61
    %vm82 = vmand %vm78, %vm62
    %vm83 = vmand %vm75, %vm67
    %vm84 = vmand %vm76, %vm68
    %vm85 = vmand %vm77, %vm69
    %vm86 = vmand %vm78, %vm70
    %v87 = vld [vmem:[#allocation2] sm:$0xff]
    %v88 = vld [vmem:[#allocation2 + $0x8] sm:$0xff]
    %v89 = vld [vmem:[#allocation2 + $0x10] sm:$0xff]
    %v90 = vld [vmem:[#allocation2 + $0x18] sm:$0xff]
    %91 = vrot.lane.b32.xlu0 %v87, 17
    %v92 = vpop.permute.xlu0 %91
    %93 = vrot.lane.b32.xlu0 %v88, 17
    %v94 = vpop.permute.xlu0 %93
    %95 = vrot.lane.b32.xlu0 %v89, 17
    %v96 = vpop.permute.xlu0 %95
    %97 = vrot.lane.b32.xlu0 %v90, 17
    %v98 = vpop.permute.xlu0 %97
    %vm99 = vcmp.lt.s32.totalorder %v43, 17
    %v100 = vsel %vm99, %v96, %v98
    %v101 = vsel %vm99, %v94, %v96
    %v102 = vsel %vm99, %v92, %v94
    %v103 = vsel %vm99, %v98, %v92
    %v104 = vsel %vm63, 1, 0
    %v105 = vsel %vm64, 1, 0
    %v106 = vsel %vm65, 1, 0
    %v107 = vsel %vm66, 1, 0
    %vm108 = vcmp.eq.s32.totalorder %v104, 1
    %vm109 = vcmp.eq.s32.totalorder %v105, 1
    %vm110 = vcmp.eq.s32.totalorder %v106, 1
    %vm111 = vcmp.eq.s32.totalorder %v107, 1
    %v112 = vsel %vm108, %v103, 0.0
    %v113 = vsel %vm109, %v102, 0.0
    %v114 = vsel %vm110, %v101, 0.0
    %v115 = vsel %vm111, %v100, 0.0
    %v116 = vpack.c.bf16 %v113, %v112
    %v117 = vpack.c.bf16 %v115, %v114
    %118 = vrot.lane.b32.xlu0 %v87, 16
    %v119 = vpop.permute.xlu0 %118
    %120 = vrot.lane.b32.xlu0 %v88, 16
    %v121 = vpop.permute.xlu0 %120
    %122 = vrot.lane.b32.xlu0 %v89, 16
    %v123 = vpop.permute.xlu0 %122
    %124 = vrot.lane.b32.xlu0 %v90, 16
    %v125 = vpop.permute.xlu0 %124
    %vm126 = vcmp.lt.s32.totalorder %v43, 16
    %v127 = vsel %vm126, %v123, %v125
    %v128 = vsel %vm126, %v121, %v123
    %v129 = vsel %vm126, %v119, %v121
    %v130 = vsel %vm126, %v125, %v119
    %v131 = vsel %vm55, 1, 0
    %v132 = vsel %vm56, 1, 0
    %v133 = vsel %vm57, 1, 0
    %v134 = vsel %vm58, 1, 0
    %vm135 = vcmp.eq.s32.totalorder %v131, 1
    %vm136 = vcmp.eq.s32.totalorder %v132, 1
    %vm137 = vcmp.eq.s32.totalorder %v133, 1
    %vm138 = vcmp.eq.s32.totalorder %v134, 1
    %v139 = vsel %vm135, %v130, 0.0
    %v140 = vsel %vm136, %v129, 0.0
    %v141 = vsel %vm137, %v128, 0.0
    %v142 = vsel %vm138, %v127, 0.0
    %v143 = vpack.c.bf16 %v140, %v139
    %v144 = vpack.c.bf16 %v142, %v141
    %145 = vrot.lane.b32.xlu0 %v87, 15
    %v146 = vpop.permute.xlu0 %145
    %147 = vrot.lane.b32.xlu0 %v88, 15
    %v148 = vpop.permute.xlu0 %147
    %149 = vrot.lane.b32.xlu0 %v89, 15
    %v150 = vpop.permute.xlu0 %149
    %151 = vrot.lane.b32.xlu0 %v90, 15
    %v152 = vpop.permute.xlu0 %151
    %vm153 = vcmp.lt.s32.totalorder %v43, 15
    %v154 = vsel %vm153, %v150, %v152
    %v155 = vsel %vm153, %v148, %v150
    %v156 = vsel %vm153, %v146, %v148
    %v157 = vsel %vm153, %v152, %v146
    %v158 = vsel %vm71, 1, 0
    %v159 = vsel %vm72, 1, 0
    %v160 = vsel %vm73, 1, 0
    %v161 = vsel %vm74, 1, 0
    %vm162 = vcmp.eq.s32.totalorder %v158, 1
    %vm163 = vcmp.eq.s32.totalorder %v159, 1
    %vm164 = vcmp.eq.s32.totalorder %v160, 1
    %vm165 = vcmp.eq.s32.totalorder %v161, 1
    %v166 = vsel %vm162, %v157, 0.0
    %v167 = vsel %vm163, %v156, 0.0
    %v168 = vsel %vm164, %v155, 0.0
    %v169 = vsel %vm165, %v154, 0.0
    %v170 = vpack.c.bf16 %v167, %v166
    %v171 = vpack.c.bf16 %v169, %v168
    %172 = vrot.lane.b32.xlu0 %v87, 1
    %v173 = vpop.permute.xlu0 %172
    %174 = vrot.lane.b32.xlu0 %v88, 1
    %v175 = vpop.permute.xlu0 %174
    %176 = vrot.lane.b32.xlu0 %v89, 1
    %v177 = vpop.permute.xlu0 %176
    %178 = vrot.lane.b32.xlu0 %v90, 1
    %v179 = vpop.permute.xlu0 %178
    %vm180 = vcmp.lt.s32.totalorder %v43, 1
    %v181 = vsel %vm180, %v177, %v179
    %v182 = vsel %vm180, %v175, %v177
    %v183 = vsel %vm180, %v173, %v175
    %v184 = vsel %vm180, %v179, %v173
    %v185 = vsel %vm59, 1, 0
    %v186 = vsel %vm60, 1, 0
    %v187 = vsel %vm61, 1, 0
    %v188 = vsel %vm62, 1, 0
    %vm189 = vcmp.eq.s32.totalorder %v185, 1
    %vm190 = vcmp.eq.s32.totalorder %v186, 1
    %vm191 = vcmp.eq.s32.totalorder %v187, 1
    %vm192 = vcmp.eq.s32.totalorder %v188, 1
    %v193 = vsel %vm189, %v184, 0.0
    %v194 = vsel %vm190, %v183, 0.0
    %v195 = vsel %vm191, %v182, 0.0
    %v196 = vsel %vm192, %v181, 0.0
    %v197 = vpack.c.bf16 %v194, %v193
    %v198 = vpack.c.bf16 %v196, %v195
    %v199 = vpack.c.bf16 %v88, %v87
    %v200 = vpack.c.bf16 %v90, %v89
    %201 = vrot.lane.b32.xlu0 %v87, 127
    %v202 = vpop.permute.xlu0 %201
    %203 = vrot.lane.b32.xlu0 %v88, 127
    %v204 = vpop.permute.xlu0 %203
    %205 = vrot.lane.b32.xlu0 %v89, 127
    %v206 = vpop.permute.xlu0 %205
    %207 = vrot.lane.b32.xlu0 %v90, 127
    %v208 = vpop.permute.xlu0 %207
    %vm209 = vcmp.lt.s32.totalorder %v43, 127
    %v210 = vsel %vm209, %v206, %v208
    %v211 = vsel %vm209, %v204, %v206
    %v212 = vsel %vm209, %v202, %v204
    %v213 = vsel %vm209, %v208, %v202
    %v214 = vsel %vm67, 1, 0
    %v215 = vsel %vm68, 1, 0
    %v216 = vsel %vm69, 1, 0
    %v217 = vsel %vm70, 1, 0
    %vm218 = vcmp.eq.s32.totalorder %v214, 1
    %vm219 = vcmp.eq.s32.totalorder %v215, 1
    %vm220 = vcmp.eq.s32.totalorder %v216, 1
    %vm221 = vcmp.eq.s32.totalorder %v217, 1
    %v222 = vsel %vm218, %v212, 0.0
    %v223 = vsel %vm219, %v211, 0.0
    %v224 = vsel %vm220, %v210, 0.0
    %v225 = vsel %vm221, %v213, 0.0
    %v226 = vpack.c.bf16 %v223, %v222
    %v227 = vpack.c.bf16 %v225, %v224
    %228 = vrot.lane.b32.xlu0 %v87, 113
    %v229 = vpop.permute.xlu0 %228
    %230 = vrot.lane.b32.xlu0 %v88, 113
    %v231 = vpop.permute.xlu0 %230
    %232 = vrot.lane.b32.xlu0 %v89, 113
    %v233 = vpop.permute.xlu0 %232
    %234 = vrot.lane.b32.xlu0 %v90, 113
    %v235 = vpop.permute.xlu0 %234
    %vm236 = vcmp.lt.s32.totalorder %v43, 113
    %v237 = vsel %vm236, %v233, %v235
    %v238 = vsel %vm236, %v231, %v233
    %v239 = vsel %vm236, %v229, %v231
    %v240 = vsel %vm236, %v235, %v229
    %v241 = vsel %vm79, 1, 0
    %v242 = vsel %vm80, 1, 0
    %v243 = vsel %vm81, 1, 0
    %v244 = vsel %vm82, 1, 0
    %vm245 = vcmp.eq.s32.totalorder %v241, 1
    %vm246 = vcmp.eq.s32.totalorder %v242, 1
    %vm247 = vcmp.eq.s32.totalorder %v243, 1
    %vm248 = vcmp.eq.s32.totalorder %v244, 1
    %v249 = vsel %vm245, %v239, 0.0
    %v250 = vsel %vm246, %v238, 0.0
    %v251 = vsel %vm247, %v237, 0.0
    %v252 = vsel %vm248, %v240, 0.0
    %v253 = vpack.c.bf16 %v250, %v249
    %v254 = vpack.c.bf16 %v252, %v251
    %255 = vrot.lane.b32.xlu0 %v87, 112
    %v256 = vpop.permute.xlu0 %255
    %257 = vrot.lane.b32.xlu0 %v88, 112
    %v258 = vpop.permute.xlu0 %257
    %259 = vrot.lane.b32.xlu0 %v89, 112
    %v260 = vpop.permute.xlu0 %259
    %261 = vrot.lane.b32.xlu0 %v90, 112
    %v262 = vpop.permute.xlu0 %261
    %vm263 = vcmp.lt.s32.totalorder %v43, 112
    %v264 = vsel %vm263, %v260, %v262
    %v265 = vsel %vm263, %v258, %v260
    %v266 = vsel %vm263, %v256, %v258
    %v267 = vsel %vm263, %v262, %v256
    %v268 = vsel %vm75, 1, 0
    %v269 = vsel %vm76, 1, 0
    %v270 = vsel %vm77, 1, 0
    %v271 = vsel %vm78, 1, 0
    %vm272 = vcmp.eq.s32.totalorder %v268, 1
    %vm273 = vcmp.eq.s32.totalorder %v269, 1
    %vm274 = vcmp.eq.s32.totalorder %v270, 1
    %vm275 = vcmp.eq.s32.totalorder %v271, 1
    %v276 = vsel %vm272, %v266, 0.0
    %v277 = vsel %vm273, %v265, 0.0
    %v278 = vsel %vm274, %v264, 0.0
    %v279 = vsel %vm275, %v267, 0.0
    %v280 = vpack.c.bf16 %v277, %v276
    %v281 = vpack.c.bf16 %v279, %v278
    %282 = vrot.lane.b32.xlu0 %v87, 111
    %v283 = vpop.permute.xlu0 %282
    %284 = vrot.lane.b32.xlu0 %v88, 111
    %v285 = vpop.permute.xlu0 %284
    %286 = vrot.lane.b32.xlu0 %v89, 111
    %v287 = vpop.permute.xlu0 %286
    %288 = vrot.lane.b32.xlu0 %v90, 111
    %v289 = vpop.permute.xlu0 %288
    %vm290 = vcmp.lt.s32.totalorder %v43, 111
    %v291 = vsel %vm290, %v287, %v289
    %v292 = vsel %vm290, %v285, %v287
    %v293 = vsel %vm290, %v283, %v285
    %v294 = vsel %vm290, %v289, %v283
    %v295 = vsel %vm83, 1, 0
    %v296 = vsel %vm84, 1, 0
    %v297 = vsel %vm85, 1, 0
    %v298 = vsel %vm86, 1, 0
    %vm299 = vcmp.eq.s32.totalorder %v295, 1
    %vm300 = vcmp.eq.s32.totalorder %v296, 1
    %vm301 = vcmp.eq.s32.totalorder %v297, 1
    %vm302 = vcmp.eq.s32.totalorder %v298, 1
    %v303 = vsel %vm299, %v293, 0.0
    %v304 = vsel %vm300, %v292, 0.0
    %v305 = vsel %vm301, %v291, 0.0
    %v306 = vsel %vm302, %v294, 0.0
    %v307 = vpack.c.bf16 %v304, %v303
    %v308 = vpack.c.bf16 %v306, %v305
    %v311 = vunpack.c.l.b16 %v116
    %v312 = vunpack.c.h.b16 %v116
    %v313 = vunpack.c.l.b16 %v117
    %v314 = vunpack.c.h.b16 %v117
    %v315 = vpack.c.b16 %v311, %v311
    %v316 = vpack.c.b16 %v312, %v312
    %v317 = vpack.c.b16 %v313, %v313
    %v318 = vpack.c.b16 %v314, %v314
    %v321 = vunpack.c.l.b16 %v143
    %v322 = vunpack.c.h.b16 %v143
    %v323 = vunpack.c.l.b16 %v144
    %v324 = vunpack.c.h.b16 %v144
    %v325 = vpack.c.b16 %v321, %v321
    %v326 = vpack.c.b16 %v322, %v322
    %v327 = vpack.c.b16 %v323, %v323
    %v328 = vpack.c.b16 %v324, %v324
    %v331 = vunpack.c.l.b16 %v170
    %v332 = vunpack.c.h.b16 %v170
    %v333 = vunpack.c.l.b16 %v171
    %v334 = vunpack.c.h.b16 %v171
    %v335 = vpack.c.b16 %v331, %v331
    %v336 = vpack.c.b16 %v332, %v332
    %v337 = vpack.c.b16 %v333, %v333
    %v338 = vpack.c.b16 %v334, %v334
    %v341 = vunpack.c.l.b16 %v197
    %v342 = vunpack.c.h.b16 %v197
    %v343 = vunpack.c.l.b16 %v198
    %v344 = vunpack.c.h.b16 %v198
    %v345 = vpack.c.b16 %v341, %v341
    %v346 = vpack.c.b16 %v342, %v342
    %v347 = vpack.c.b16 %v343, %v343
    %v348 = vpack.c.b16 %v344, %v344
    %v351 = vunpack.c.l.b16 %v199
    %v352 = vunpack.c.h.b16 %v199
    %v353 = vunpack.c.l.b16 %v200
    %v354 = vunpack.c.h.b16 %v200
    %v355 = vpack.c.b16 %v351, %v351
    %v356 = vpack.c.b16 %v352, %v352
    %v357 = vpack.c.b16 %v353, %v353
    %v358 = vpack.c.b16 %v354, %v354
    %v361 = vunpack.c.l.b16 %v226
    %v362 = vunpack.c.h.b16 %v226
    %v363 = vunpack.c.l.b16 %v227
    %v364 = vunpack.c.h.b16 %v227
    %v365 = vpack.c.b16 %v361, %v361
    %v366 = vpack.c.b16 %v362, %v362
    %v367 = vpack.c.b16 %v363, %v363
    %v368 = vpack.c.b16 %v364, %v364
    %v371 = vunpack.c.l.b16 %v253
    %v372 = vunpack.c.h.b16 %v253
    %v373 = vunpack.c.l.b16 %v254
    %v374 = vunpack.c.h.b16 %v254
    %v375 = vpack.c.b16 %v371, %v371
    %v376 = vpack.c.b16 %v372, %v372
    %v377 = vpack.c.b16 %v373, %v373
    %v378 = vpack.c.b16 %v374, %v374
    %v381 = vunpack.c.l.b16 %v280
    %v382 = vunpack.c.h.b16 %v280
    %v383 = vunpack.c.l.b16 %v281
    %v384 = vunpack.c.h.b16 %v281
    %v385 = vpack.c.b16 %v381, %v381
    %v386 = vpack.c.b16 %v382, %v382
    %v387 = vpack.c.b16 %v383, %v383
    %v388 = vpack.c.b16 %v384, %v384
    %v391 = vunpack.c.l.b16 %v307
    %v392 = vunpack.c.h.b16 %v307
    %v393 = vunpack.c.l.b16 %v308
    %v394 = vunpack.c.h.b16 %v308
    %v395 = vpack.c.b16 %v391, %v391
    %v396 = vpack.c.b16 %v392, %v392
    %v397 = vpack.c.b16 %v393, %v393
    %v398 = vpack.c.b16 %v394, %v394
    %vm399 = vcmask 1043456
    %v402 = vsel %vm399, %v315, %v325
    %v406 = vsel %vm399, %v316, %v326
    %v410 = vsel %vm399, %v317, %v327
    %v414 = vsel %vm399, %v318, %v328
    %v418 = vsel %vm399, %v335, %v345
    %v422 = vsel %vm399, %v336, %v346
    %v426 = vsel %vm399, %v337, %v347
    %v430 = vsel %vm399, %v338, %v348
    %v434 = vsel %vm399, %v355, %v365
    %v438 = vsel %vm399, %v356, %v366
    %v442 = vsel %vm399, %v357, %v367
    %v446 = vsel %vm399, %v358, %v368
    %v450 = vsel %vm399, %v375, %v385
    %v454 = vsel %vm399, %v376, %v386
    %v458 = vsel %vm399, %v377, %v387
    %v462 = vsel %vm399, %v378, %v388
    %v464 = vld [vmem:[%s1] sm:$0xf]
    %v465 = vld [vmem:[%s2] sm:$0xff]
    %467 = vset.pattern.permute.xlu0 0
    %468 = vperm.xlu0 %467, %v465
    %v469 = vpop.permute.xlu0 %468
    %vm471 = vcmask 588800
    %v473 = vsel %vm471, %v464, 0
    %v476 = vsel %vm399, %v395, 0
    %v479 = vsel %vm399, %v396, 0
    %v482 = vsel %vm399, %v397, 0
    %v485 = vsel %vm399, %v398, 0
    %487 = vmatpush.bf16.msra.mxu0 0
    %488 = vmatpush.bf16.msra.mxu0 0
    %489 = vmatpush.bf16.msra.mxu0 0
    %490 = vmatpush.bf16.msra.mxu0 %v476
    %491 = vmatpush.bf16.msra.mxu0 %v450
    %492 = vmatpush.bf16.msra.mxu0 %v434
    %493 = vmatpush.bf16.msra.mxu0 %v418
    %494 = vmatpush.bf16.msra.mxu0 %v402
    %495 = vmatmul.bf16.gmra.mxu0 %v473
    %v496 = vpop.f32.mrf.mxu0
    %v497 = vadd.f32 %v469, %v496
    %v498 = vpop.f32.mrf.mxu0
    %499 = vdwg.mxu0
    %500 = vmatpush.bf16.msra.mxu0 0
    %501 = vmatpush.bf16.msra.mxu0 0
    %502 = vmatpush.bf16.msra.mxu0 0
    %503 = vmatpush.bf16.msra.mxu0 %v479
    %504 = vmatpush.bf16.msra.mxu0 %v454
    %505 = vmatpush.bf16.msra.mxu0 %v438
    %506 = vmatpush.bf16.msra.mxu0 %v422
    %507 = vmatpush.bf16.msra.mxu0 %v406
    %508 = vmatmul.bf16.gmra.mxu0 %v473
    %v509 = vpop.f32.mrf.mxu0
    %v510 = vadd.f32 %v469, %v509
    %v511 = vpop.f32.mrf.mxu0
    %512 = vdwg.mxu0
    %513 = vmatpush.bf16.msra.mxu0 0
    %514 = vmatpush.bf16.msra.mxu0 0
    %515 = vmatpush.bf16.msra.mxu0 0
    %516 = vmatpush.bf16.msra.mxu0 %v482
    %517 = vmatpush.bf16.msra.mxu0 %v458
    %518 = vmatpush.bf16.msra.mxu0 %v442
    %519 = vmatpush.bf16.msra.mxu0 %v426
    %520 = vmatpush.bf16.msra.mxu0 %v410
    %521 = vmatmul.bf16.gmra.mxu0 %v473
    %v522 = vpop.f32.mrf.mxu0
    %v523 = vadd.f32 %v469, %v522
    %v524 = vpop.f32.mrf.mxu0
    %525 = vdwg.mxu0
    %526 = vmatpush.bf16.msra.mxu0 0
    %527 = vmatpush.bf16.msra.mxu0 0
    %528 = vmatpush.bf16.msra.mxu0 0
    %529 = vmatpush.bf16.msra.mxu0 %v485
    %530 = vmatpush.bf16.msra.mxu0 %v462
    %531 = vmatpush.bf16.msra.mxu0 %v446
    %532 = vmatpush.bf16.msra.mxu0 %v430
    %533 = vmatpush.bf16.msra.mxu0 %v414
    %534 = vmatmul.bf16.gmra.mxu0 %v473
    %v535 = vpop.f32.mrf.mxu0
    %v536 = vadd.f32 %v469, %v535
    %v537 = vpop.f32.mrf.mxu0
    %538 = vdwg.mxu0
    %vm539 = vcmp.gt.f32.partialorder %v497, 0.0
    %vm540 = vcmp.gt.f32.partialorder %v510, 0.0
    %vm541 = vcmp.gt.f32.partialorder %v523, 0.0
    %vm542 = vcmp.gt.f32.partialorder %v536, 0.0
    %v543 = vmul.f32 %v497, 0.01
    %v544 = vmul.f32 %v510, 0.01
    %v545 = vmul.f32 %v523, 0.01
    %v546 = vmul.f32 %v536, 0.01
    %v547 = vsel %vm539, %v497, %v543
    %v548 = vsel %vm540, %v510, %v544
    %v549 = vsel %vm541, %v523, %v545
    %v550 = vsel %vm542, %v536, %v546
    %551 = vrot.lane.b32.xlu0 %v547, 17
    %v552 = vpop.permute.xlu0 %551
    %553 = vrot.lane.b32.xlu0 %v548, 17
    %v554 = vpop.permute.xlu0 %553
    %555 = vrot.lane.b32.xlu0 %v549, 17
    %v556 = vpop.permute.xlu0 %555
    %557 = vrot.lane.b32.xlu0 %v550, 17
    %v558 = vpop.permute.xlu0 %557
    %v559 = vsel %vm99, %v556, %v558
    %v560 = vsel %vm99, %v554, %v556
    %v561 = vsel %vm99, %v552, %v554
    %v562 = vsel %vm99, %v558, %v552
    %v563 = vsel %vm108, %v562, 0.0
    %v564 = vsel %vm109, %v561, 0.0
    %v565 = vsel %vm110, %v560, 0.0
    %v566 = vsel %vm111, %v559, 0.0
    %v567 = vpack.c.bf16 %v564, %v563
    %v568 = vpack.c.bf16 %v566, %v565
    %569 = vrot.lane.b32.xlu0 %v547, 16
    %v570 = vpop.permute.xlu0 %569
    %571 = vrot.lane.b32.xlu0 %v548, 16
    %v572 = vpop.permute.xlu0 %571
    %573 = vrot.lane.b32.xlu0 %v549, 16
    %v574 = vpop.permute.xlu0 %573
    %575 = vrot.lane.b32.xlu0 %v550, 16
    %v576 = vpop.permute.xlu0 %575
    %v577 = vsel %vm126, %v574, %v576
    %v578 = vsel %vm126, %v572, %v574
    %v579 = vsel %vm126, %v570, %v572
    %v580 = vsel %vm126, %v576, %v570
    %v581 = vsel %vm135, %v580, 0.0
    %v582 = vsel %vm136, %v579, 0.0
    %v583 = vsel %vm137, %v578, 0.0
    %v584 = vsel %vm138, %v577, 0.0
    %v585 = vpack.c.bf16 %v582, %v581
    %v586 = vpack.c.bf16 %v584, %v583
    %587 = vrot.lane.b32.xlu0 %v547, 15
    %v588 = vpop.permute.xlu0 %587
    %589 = vrot.lane.b32.xlu0 %v548, 15
    %v590 = vpop.permute.xlu0 %589
    %591 = vrot.lane.b32.xlu0 %v549, 15
    %v592 = vpop.permute.xlu0 %591
    %593 = vrot.lane.b32.xlu0 %v550, 15
    %v594 = vpop.permute.xlu0 %593
    %v595 = vsel %vm153, %v592, %v594
    %v596 = vsel %vm153, %v590, %v592
    %v597 = vsel %vm153, %v588, %v590
    %v598 = vsel %vm153, %v594, %v588
    %v599 = vsel %vm162, %v598, 0.0
    %v600 = vsel %vm163, %v597, 0.0
    %v601 = vsel %vm164, %v596, 0.0
    %v602 = vsel %vm165, %v595, 0.0
    %v603 = vpack.c.bf16 %v600, %v599
    %v604 = vpack.c.bf16 %v602, %v601
    %605 = vrot.lane.b32.xlu0 %v547, 1
    %v606 = vpop.permute.xlu0 %605
    %607 = vrot.lane.b32.xlu0 %v548, 1
    %v608 = vpop.permute.xlu0 %607
    %609 = vrot.lane.b32.xlu0 %v549, 1
    %v610 = vpop.permute.xlu0 %609
    %611 = vrot.lane.b32.xlu0 %v550, 1
    %v612 = vpop.permute.xlu0 %611
    %v613 = vsel %vm180, %v610, %v612
    %v614 = vsel %vm180, %v608, %v610
    %v615 = vsel %vm180, %v606, %v608
    %v616 = vsel %vm180, %v612, %v606
    %v617 = vsel %vm189, %v616, 0.0
    %v618 = vsel %vm190, %v615, 0.0
    %v619 = vsel %vm191, %v614, 0.0
    %v620 = vsel %vm192, %v613, 0.0
    %v621 = vpack.c.bf16 %v618, %v617
    %v622 = vpack.c.bf16 %v620, %v619
    %v623 = vpack.c.bf16 %v548, %v547
    %v624 = vpack.c.bf16 %v550, %v549
    %625 = vrot.lane.b32.xlu0 %v547, 127
    %v626 = vpop.permute.xlu0 %625
    %627 = vrot.lane.b32.xlu0 %v548, 127
    %v628 = vpop.permute.xlu0 %627
    %629 = vrot.lane.b32.xlu0 %v549, 127
    %v630 = vpop.permute.xlu0 %629
    %631 = vrot.lane.b32.xlu0 %v550, 127
    %v632 = vpop.permute.xlu0 %631
    %v633 = vsel %vm209, %v630, %v632
    %v634 = vsel %vm209, %v628, %v630
    %v635 = vsel %vm209, %v626, %v628
    %v636 = vsel %vm209, %v632, %v626
    %v637 = vsel %vm218, %v635, 0.0
    %v638 = vsel %vm219, %v634, 0.0
    %v639 = vsel %vm220, %v633, 0.0
    %v640 = vsel %vm221, %v636, 0.0
    %v641 = vpack.c.bf16 %v638, %v637
    %v642 = vpack.c.bf16 %v640, %v639
    %643 = vrot.lane.b32.xlu0 %v547, 113
    %v644 = vpop.permute.xlu0 %643
    %645 = vrot.lane.b32.xlu0 %v548, 113
    %v646 = vpop.permute.xlu0 %645
    %647 = vrot.lane.b32.xlu0 %v549, 113
    %v648 = vpop.permute.xlu0 %647
    %649 = vrot.lane.b32.xlu0 %v550, 113
    %v650 = vpop.permute.xlu0 %649
    %v651 = vsel %vm236, %v648, %v650
    %v652 = vsel %vm236, %v646, %v648
    %v653 = vsel %vm236, %v644, %v646
    %v654 = vsel %vm236, %v650, %v644
    %v655 = vsel %vm245, %v653, 0.0
    %v656 = vsel %vm246, %v652, 0.0
    %v657 = vsel %vm247, %v651, 0.0
    %v658 = vsel %vm248, %v654, 0.0
    %v659 = vpack.c.bf16 %v656, %v655
    %v660 = vpack.c.bf16 %v658, %v657
    %661 = vrot.lane.b32.xlu0 %v547, 112
    %v662 = vpop.permute.xlu0 %661
    %663 = vrot.lane.b32.xlu0 %v548, 112
    %v664 = vpop.permute.xlu0 %663
    %665 = vrot.lane.b32.xlu0 %v549, 112
    %v666 = vpop.permute.xlu0 %665
    %667 = vrot.lane.b32.xlu0 %v550, 112
    %v668 = vpop.permute.xlu0 %667
    %v669 = vsel %vm263, %v666, %v668
    %v670 = vsel %vm263, %v664, %v666
    %v671 = vsel %vm263, %v662, %v664
    %v672 = vsel %vm263, %v668, %v662
    %v673 = vsel %vm272, %v671, 0.0
    %v674 = vsel %vm273, %v670, 0.0
    %v675 = vsel %vm274, %v669, 0.0
    %v676 = vsel %vm275, %v672, 0.0
    %v677 = vpack.c.bf16 %v674, %v673
    %v678 = vpack.c.bf16 %v676, %v675
    %679 = vrot.lane.b32.xlu0 %v547, 111
    %v680 = vpop.permute.xlu0 %679
    %681 = vrot.lane.b32.xlu0 %v548, 111
    %v682 = vpop.permute.xlu0 %681
    %683 = vrot.lane.b32.xlu0 %v549, 111
    %v684 = vpop.permute.xlu0 %683
    %685 = vrot.lane.b32.xlu0 %v550, 111
    %v686 = vpop.permute.xlu0 %685
    %v687 = vsel %vm290, %v684, %v686
    %v688 = vsel %vm290, %v682, %v684
    %v689 = vsel %vm290, %v680, %v682
    %v690 = vsel %vm290, %v686, %v680
    %v691 = vsel %vm299, %v689, 0.0
    %v692 = vsel %vm300, %v688, 0.0
    %v693 = vsel %vm301, %v687, 0.0
    %v694 = vsel %vm302, %v690, 0.0
    %v695 = vpack.c.bf16 %v692, %v691
    %v696 = vpack.c.bf16 %v694, %v693
    %v699 = vunpack.c.l.b16 %v567
    %v700 = vunpack.c.h.b16 %v567
    %v701 = vunpack.c.l.b16 %v568
    %v702 = vunpack.c.h.b16 %v568
    %v703 = vpack.c.b16 %v699, %v699
    %v704 = vpack.c.b16 %v700, %v700
    %v705 = vpack.c.b16 %v701, %v701
    %v706 = vpack.c.b16 %v702, %v702
    %v709 = vunpack.c.l.b16 %v585
    %v710 = vunpack.c.h.b16 %v585
    %v711 = vunpack.c.l.b16 %v586
    %v712 = vunpack.c.h.b16 %v586
    %v713 = vpack.c.b16 %v709, %v709
    %v714 = vpack.c.b16 %v710, %v710
    %v715 = vpack.c.b16 %v711, %v711
    %v716 = vpack.c.b16 %v712, %v712
    %v719 = vunpack.c.l.b16 %v603
    %v720 = vunpack.c.h.b16 %v603
    %v721 = vunpack.c.l.b16 %v604
    %v722 = vunpack.c.h.b16 %v604
    %v723 = vpack.c.b16 %v719, %v719
    %v724 = vpack.c.b16 %v720, %v720
    %v725 = vpack.c.b16 %v721, %v721
    %v726 = vpack.c.b16 %v722, %v722
    %v729 = vunpack.c.l.b16 %v621
    %v730 = vunpack.c.h.b16 %v621
    %v731 = vunpack.c.l.b16 %v622
    %v732 = vunpack.c.h.b16 %v622
    %v733 = vpack.c.b16 %v729, %v729
    %v734 = vpack.c.b16 %v730, %v730
    %v735 = vpack.c.b16 %v731, %v731
    %v736 = vpack.c.b16 %v732, %v732
    %v739 = vunpack.c.l.b16 %v623
    %v740 = vunpack.c.h.b16 %v623
    %v741 = vunpack.c.l.b16 %v624
    %v742 = vunpack.c.h.b16 %v624
    %v743 = vpack.c.b16 %v739, %v739
    %v744 = vpack.c.b16 %v740, %v740
    %v745 = vpack.c.b16 %v741, %v741
    %v746 = vpack.c.b16 %v742, %v742
    %v749 = vunpack.c.l.b16 %v641
    %v750 = vunpack.c.h.b16 %v641
    %v751 = vunpack.c.l.b16 %v642
    %v752 = vunpack.c.h.b16 %v642
    %v753 = vpack.c.b16 %v749, %v749
    %v754 = vpack.c.b16 %v750, %v750
    %v755 = vpack.c.b16 %v751, %v751
    %v756 = vpack.c.b16 %v752, %v752
    %v759 = vunpack.c.l.b16 %v659
    %v760 = vunpack.c.h.b16 %v659
    %v761 = vunpack.c.l.b16 %v660
    %v762 = vunpack.c.h.b16 %v660
    %v763 = vpack.c.b16 %v759, %v759
    %v764 = vpack.c.b16 %v760, %v760
    %v765 = vpack.c.b16 %v761, %v761
    %v766 = vpack.c.b16 %v762, %v762
    %v769 = vunpack.c.l.b16 %v677
    %v770 = vunpack.c.h.b16 %v677
    %v771 = vunpack.c.l.b16 %v678
    %v772 = vunpack.c.h.b16 %v678
    %v773 = vpack.c.b16 %v769, %v769
    %v774 = vpack.c.b16 %v770, %v770
    %v775 = vpack.c.b16 %v771, %v771
    %v776 = vpack.c.b16 %v772, %v772
    %v779 = vunpack.c.l.b16 %v695
    %v780 = vunpack.c.h.b16 %v695
    %v781 = vunpack.c.l.b16 %v696
    %v782 = vunpack.c.h.b16 %v696
    %v783 = vpack.c.b16 %v779, %v779
    %v784 = vpack.c.b16 %v780, %v780
    %v785 = vpack.c.b16 %v781, %v781
    %v786 = vpack.c.b16 %v782, %v782
    %v789 = vsel %vm399, %v703, %v713
    %v793 = vsel %vm399, %v704, %v714
    %v797 = vsel %vm399, %v705, %v715
    %v801 = vsel %vm399, %v706, %v716
    %v805 = vsel %vm399, %v723, %v733
    %v809 = vsel %vm399, %v724, %v734
    %v813 = vsel %vm399, %v725, %v735
    %v817 = vsel %vm399, %v726, %v736
    %v821 = vsel %vm399, %v743, %v753
    %v825 = vsel %vm399, %v744, %v754
    %v829 = vsel %vm399, %v745, %v755
    %v833 = vsel %vm399, %v746, %v756
    %v837 = vsel %vm399, %v763, %v773
    %v841 = vsel %vm399, %v764, %v774
    %v845 = vsel %vm399, %v765, %v775
    %v849 = vsel %vm399, %v766, %v776
    %v851 = vld [vmem:[%s3] sm:$0xf]
    %v852 = vld [vmem:[%s4] sm:$0xff]
    %854 = vset.pattern.permute.xlu0 0
    %855 = vperm.xlu0 %854, %v852
    %v856 = vpop.permute.xlu0 %855
    %v859 = vsel %vm471, %v851, 0
    %v862 = vsel %vm399, %v783, 0
    %v865 = vsel %vm399, %v784, 0
    %v868 = vsel %vm399, %v785, 0
    %v871 = vsel %vm399, %v786, 0
    %873 = vmatpush.bf16.msra.mxu0 0
    %874 = vmatpush.bf16.msra.mxu0 0
    %875 = vmatpush.bf16.msra.mxu0 0
    %876 = vmatpush.bf16.msra.mxu0 %v862
    %877 = vmatpush.bf16.msra.mxu0 %v837
    %878 = vmatpush.bf16.msra.mxu0 %v821
    %879 = vmatpush.bf16.msra.mxu0 %v805
    %880 = vmatpush.bf16.msra.mxu0 %v789
    %881 = vmatmul.bf16.gmra.mxu0 %v859
    %v882 = vpop.f32.mrf.mxu0
    %v883 = vadd.f32 %v856, %v882
    %v884 = vpop.f32.mrf.mxu0
    %885 = vdwg.mxu0
    %886 = vmatpush.bf16.msra.mxu0 0
    %887 = vmatpush.bf16.msra.mxu0 0
    %888 = vmatpush.bf16.msra.mxu0 0
    %889 = vmatpush.bf16.msra.mxu0 %v865
    %890 = vmatpush.bf16.msra.mxu0 %v841
    %891 = vmatpush.bf16.msra.mxu0 %v825
    %892 = vmatpush.bf16.msra.mxu0 %v809
    %893 = vmatpush.bf16.msra.mxu0 %v793
    %894 = vmatmul.bf16.gmra.mxu0 %v859
    %v895 = vpop.f32.mrf.mxu0
    %v896 = vadd.f32 %v856, %v895
    %v897 = vpop.f32.mrf.mxu0
    %898 = vdwg.mxu0
    %899 = vmatpush.bf16.msra.mxu0 0
    %900 = vmatpush.bf16.msra.mxu0 0
    %901 = vmatpush.bf16.msra.mxu0 0
    %902 = vmatpush.bf16.msra.mxu0 %v868
    %903 = vmatpush.bf16.msra.mxu0 %v845
    %904 = vmatpush.bf16.msra.mxu0 %v829
    %905 = vmatpush.bf16.msra.mxu0 %v813
    %906 = vmatpush.bf16.msra.mxu0 %v797
    %907 = vmatmul.bf16.gmra.mxu0 %v859
    %v908 = vpop.f32.mrf.mxu0
    %v909 = vadd.f32 %v856, %v908
    %v910 = vpop.f32.mrf.mxu0
    %911 = vdwg.mxu0
    %912 = vmatpush.bf16.msra.mxu0 0
    %913 = vmatpush.bf16.msra.mxu0 0
    %914 = vmatpush.bf16.msra.mxu0 0
    %915 = vmatpush.bf16.msra.mxu0 %v871
    %916 = vmatpush.bf16.msra.mxu0 %v849
    %917 = vmatpush.bf16.msra.mxu0 %v833
    %918 = vmatpush.bf16.msra.mxu0 %v817
    %919 = vmatpush.bf16.msra.mxu0 %v801
    %920 = vmatmul.bf16.gmra.mxu0 %v859
    %v921 = vpop.f32.mrf.mxu0
    %v922 = vadd.f32 %v856, %v921
    %v923 = vpop.f32.mrf.mxu0
    %924 = vdwg.mxu0
    %vm925 = vcmp.gt.f32.partialorder %v883, 0.0
    %vm926 = vcmp.gt.f32.partialorder %v896, 0.0
    %vm927 = vcmp.gt.f32.partialorder %v909, 0.0
    %vm928 = vcmp.gt.f32.partialorder %v922, 0.0
    %v929 = vmul.f32 %v883, 0.01
    %v930 = vmul.f32 %v896, 0.01
    %v931 = vmul.f32 %v909, 0.01
    %v932 = vmul.f32 %v922, 0.01
    %v933 = vsel %vm925, %v883, %v929
    %v934 = vsel %vm926, %v896, %v930
    %v935 = vsel %vm927, %v909, %v931
    %v936 = vsel %vm928, %v922, %v932
    %937 = vrot.lane.b32.xlu0 %v933, 17
    %v938 = vpop.permute.xlu0 %937
    %939 = vrot.lane.b32.xlu0 %v934, 17
    %v940 = vpop.permute.xlu0 %939
    %941 = vrot.lane.b32.xlu0 %v935, 17
    %v942 = vpop.permute.xlu0 %941
    %943 = vrot.lane.b32.xlu0 %v936, 17
    %v944 = vpop.permute.xlu0 %943
    %v945 = vsel %vm99, %v942, %v944
    %v946 = vsel %vm99, %v940, %v942
    %v947 = vsel %vm99, %v938, %v940
    %v948 = vsel %vm99, %v944, %v938
    %v949 = vsel %vm108, %v948, 0.0
    %v950 = vsel %vm109, %v947, 0.0
    %v951 = vsel %vm110, %v946, 0.0
    %v952 = vsel %vm111, %v945, 0.0
    %v953 = vpack.c.bf16 %v950, %v949
    %v954 = vpack.c.bf16 %v952, %v951
    %955 = vrot.lane.b32.xlu0 %v933, 16
    %v956 = vpop.permute.xlu0 %955
    %957 = vrot.lane.b32.xlu0 %v934, 16
    %v958 = vpop.permute.xlu0 %957
    %959 = vrot.lane.b32.xlu0 %v935, 16
    %v960 = vpop.permute.xlu0 %959
    %961 = vrot.lane.b32.xlu0 %v936, 16
    %v962 = vpop.permute.xlu0 %961
    %v963 = vsel %vm126, %v960, %v962
    %v964 = vsel %vm126, %v958, %v960
    %v965 = vsel %vm126, %v956, %v958
    %v966 = vsel %vm126, %v962, %v956
    %v967 = vsel %vm135, %v966, 0.0
    %v968 = vsel %vm136, %v965, 0.0
    %v969 = vsel %vm137, %v964, 0.0
    %v970 = vsel %vm138, %v963, 0.0
    %v971 = vpack.c.bf16 %v968, %v967
    %v972 = vpack.c.bf16 %v970, %v969
    %973 = vrot.lane.b32.xlu0 %v933, 15
    %v974 = vpop.permute.xlu0 %973
    %975 = vrot.lane.b32.xlu0 %v934, 15
    %v976 = vpop.permute.xlu0 %975
    %977 = vrot.lane.b32.xlu0 %v935, 15
    %v978 = vpop.permute.xlu0 %977
    %979 = vrot.lane.b32.xlu0 %v936, 15
    %v980 = vpop.permute.xlu0 %979
    %v981 = vsel %vm153, %v978, %v980
    %v982 = vsel %vm153, %v976, %v978
    %v983 = vsel %vm153, %v974, %v976
    %v984 = vsel %vm153, %v980, %v974
    %v985 = vsel %vm162, %v984, 0.0
    %v986 = vsel %vm163, %v983, 0.0
    %v987 = vsel %vm164, %v982, 0.0
    %v988 = vsel %vm165, %v981, 0.0
    %v989 = vpack.c.bf16 %v986, %v985
    %v990 = vpack.c.bf16 %v988, %v987
    %991 = vrot.lane.b32.xlu0 %v933, 1
    %v992 = vpop.permute.xlu0 %991
    %993 = vrot.lane.b32.xlu0 %v934, 1
    %v994 = vpop.permute.xlu0 %993
    %995 = vrot.lane.b32.xlu0 %v935, 1
    %v996 = vpop.permute.xlu0 %995
    %997 = vrot.lane.b32.xlu0 %v936, 1
    %v998 = vpop.permute.xlu0 %997
    %v999 = vsel %vm180, %v996, %v998
    %v1000 = vsel %vm180, %v994, %v996
    %v1001 = vsel %vm180, %v992, %v994
    %v1002 = vsel %vm180, %v998, %v992
    %v1003 = vsel %vm189, %v1002, 0.0
    %v1004 = vsel %vm190, %v1001, 0.0
    %v1005 = vsel %vm191, %v1000, 0.0
    %v1006 = vsel %vm192, %v999, 0.0
    %v1007 = vpack.c.bf16 %v1004, %v1003
    %v1008 = vpack.c.bf16 %v1006, %v1005
    %v1009 = vpack.c.bf16 %v934, %v933
    %v1010 = vpack.c.bf16 %v936, %v935
    %1011 = vrot.lane.b32.xlu0 %v933, 127
    %v1012 = vpop.permute.xlu0 %1011
    %1013 = vrot.lane.b32.xlu0 %v934, 127
    %v1014 = vpop.permute.xlu0 %1013
    %1015 = vrot.lane.b32.xlu0 %v935, 127
    %v1016 = vpop.permute.xlu0 %1015
    %1017 = vrot.lane.b32.xlu0 %v936, 127
    %v1018 = vpop.permute.xlu0 %1017
    %v1019 = vsel %vm209, %v1016, %v1018
    %v1020 = vsel %vm209, %v1014, %v1016
    %v1021 = vsel %vm209, %v1012, %v1014
    %v1022 = vsel %vm209, %v1018, %v1012
    %v1023 = vsel %vm218, %v1021, 0.0
    %v1024 = vsel %vm219, %v1020, 0.0
    %v1025 = vsel %vm220, %v1019, 0.0
    %v1026 = vsel %vm221, %v1022, 0.0
    %v1027 = vpack.c.bf16 %v1024, %v1023
    %v1028 = vpack.c.bf16 %v1026, %v1025
    %1029 = vrot.lane.b32.xlu0 %v933, 113
    %v1030 = vpop.permute.xlu0 %1029
    %1031 = vrot.lane.b32.xlu0 %v934, 113
    %v1032 = vpop.permute.xlu0 %1031
    %1033 = vrot.lane.b32.xlu0 %v935, 113
    %v1034 = vpop.permute.xlu0 %1033
    %1035 = vrot.lane.b32.xlu0 %v936, 113
    %v1036 = vpop.permute.xlu0 %1035
    %v1037 = vsel %vm236, %v1034, %v1036
    %v1038 = vsel %vm236, %v1032, %v1034
    %v1039 = vsel %vm236, %v1030, %v1032
    %v1040 = vsel %vm236, %v1036, %v1030
    %v1041 = vsel %vm245, %v1039, 0.0
    %v1042 = vsel %vm246, %v1038, 0.0
    %v1043 = vsel %vm247, %v1037, 0.0
    %v1044 = vsel %vm248, %v1040, 0.0
    %v1045 = vpack.c.bf16 %v1042, %v1041
    %v1046 = vpack.c.bf16 %v1044, %v1043
    %1047 = vrot.lane.b32.xlu0 %v933, 112
    %v1048 = vpop.permute.xlu0 %1047
    %1049 = vrot.lane.b32.xlu0 %v934, 112
    %v1050 = vpop.permute.xlu0 %1049
    %1051 = vrot.lane.b32.xlu0 %v935, 112
    %v1052 = vpop.permute.xlu0 %1051
    %1053 = vrot.lane.b32.xlu0 %v936, 112
    %v1054 = vpop.permute.xlu0 %1053
    %v1055 = vsel %vm263, %v1052, %v1054
    %v1056 = vsel %vm263, %v1050, %v1052
    %v1057 = vsel %vm263, %v1048, %v1050
    %v1058 = vsel %vm263, %v1054, %v1048
    %v1059 = vsel %vm272, %v1057, 0.0
    %v1060 = vsel %vm273, %v1056, 0.0
    %v1061 = vsel %vm274, %v1055, 0.0
    %v1062 = vsel %vm275, %v1058, 0.0
    %v1063 = vpack.c.bf16 %v1060, %v1059
    %v1064 = vpack.c.bf16 %v1062, %v1061
    %1065 = vrot.lane.b32.xlu0 %v933, 111
    %v1066 = vpop.permute.xlu0 %1065
    %1067 = vrot.lane.b32.xlu0 %v934, 111
    %v1068 = vpop.permute.xlu0 %1067
    %1069 = vrot.lane.b32.xlu0 %v935, 111
    %v1070 = vpop.permute.xlu0 %1069
    %1071 = vrot.lane.b32.xlu0 %v936, 111
    %v1072 = vpop.permute.xlu0 %1071
    %v1073 = vsel %vm290, %v1070, %v1072
    %v1074 = vsel %vm290, %v1068, %v1070
    %v1075 = vsel %vm290, %v1066, %v1068
    %v1076 = vsel %vm290, %v1072, %v1066
    %v1077 = vsel %vm299, %v1075, 0.0
    %v1078 = vsel %vm300, %v1074, 0.0
    %v1079 = vsel %vm301, %v1073, 0.0
    %v1080 = vsel %vm302, %v1076, 0.0
    %v1081 = vpack.c.bf16 %v1078, %v1077
    %v1082 = vpack.c.bf16 %v1080, %v1079
    %v1085 = vunpack.c.l.b16 %v953
    %v1086 = vunpack.c.h.b16 %v953
    %v1087 = vunpack.c.l.b16 %v954
    %v1088 = vunpack.c.h.b16 %v954
    %v1089 = vpack.c.b16 %v1085, %v1085
    %v1090 = vpack.c.b16 %v1086, %v1086
    %v1091 = vpack.c.b16 %v1087, %v1087
    %v1092 = vpack.c.b16 %v1088, %v1088
    %v1095 = vunpack.c.l.b16 %v971
    %v1096 = vunpack.c.h.b16 %v971
    %v1097 = vunpack.c.l.b16 %v972
    %v1098 = vunpack.c.h.b16 %v972
    %v1099 = vpack.c.b16 %v1095, %v1095
    %v1100 = vpack.c.b16 %v1096, %v1096
    %v1101 = vpack.c.b16 %v1097, %v1097
    %v1102 = vpack.c.b16 %v1098, %v1098
    %v1105 = vunpack.c.l.b16 %v989
    %v1106 = vunpack.c.h.b16 %v989
    %v1107 = vunpack.c.l.b16 %v990
    %v1108 = vunpack.c.h.b16 %v990
    %v1109 = vpack.c.b16 %v1105, %v1105
    %v1110 = vpack.c.b16 %v1106, %v1106
    %v1111 = vpack.c.b16 %v1107, %v1107
    %v1112 = vpack.c.b16 %v1108, %v1108
    %v1115 = vunpack.c.l.b16 %v1007
    %v1116 = vunpack.c.h.b16 %v1007
    %v1117 = vunpack.c.l.b16 %v1008
    %v1118 = vunpack.c.h.b16 %v1008
    %v1119 = vpack.c.b16 %v1115, %v1115
    %v1120 = vpack.c.b16 %v1116, %v1116
    %v1121 = vpack.c.b16 %v1117, %v1117
    %v1122 = vpack.c.b16 %v1118, %v1118
    %v1125 = vunpack.c.l.b16 %v1009
    %v1126 = vunpack.c.h.b16 %v1009
    %v1127 = vunpack.c.l.b16 %v1010
    %v1128 = vunpack.c.h.b16 %v1010
    %v1129 = vpack.c.b16 %v1125, %v1125
    %v1130 = vpack.c.b16 %v1126, %v1126
    %v1131 = vpack.c.b16 %v1127, %v1127
    %v1132 = vpack.c.b16 %v1128, %v1128
    %v1135 = vunpack.c.l.b16 %v1027
    %v1136 = vunpack.c.h.b16 %v1027
    %v1137 = vunpack.c.l.b16 %v1028
    %v1138 = vunpack.c.h.b16 %v1028
    %v1139 = vpack.c.b16 %v1135, %v1135
    %v1140 = vpack.c.b16 %v1136, %v1136
    %v1141 = vpack.c.b16 %v1137, %v1137
    %v1142 = vpack.c.b16 %v1138, %v1138
    %v1145 = vunpack.c.l.b16 %v1045
    %v1146 = vunpack.c.h.b16 %v1045
    %v1147 = vunpack.c.l.b16 %v1046
    %v1148 = vunpack.c.h.b16 %v1046
    %v1149 = vpack.c.b16 %v1145, %v1145
    %v1150 = vpack.c.b16 %v1146, %v1146
    %v1151 = vpack.c.b16 %v1147, %v1147
    %v1152 = vpack.c.b16 %v1148, %v1148
    %v1155 = vunpack.c.l.b16 %v1063
    %v1156 = vunpack.c.h.b16 %v1063
    %v1157 = vunpack.c.l.b16 %v1064
    %v1158 = vunpack.c.h.b16 %v1064
    %v1159 = vpack.c.b16 %v1155, %v1155
    %v1160 = vpack.c.b16 %v1156, %v1156
    %v1161 = vpack.c.b16 %v1157, %v1157
    %v1162 = vpack.c.b16 %v1158, %v1158
    %v1165 = vunpack.c.l.b16 %v1081
    %v1166 = vunpack.c.h.b16 %v1081
    %v1167 = vunpack.c.l.b16 %v1082
    %v1168 = vunpack.c.h.b16 %v1082
    %v1169 = vpack.c.b16 %v1165, %v1165
    %v1170 = vpack.c.b16 %v1166, %v1166
    %v1171 = vpack.c.b16 %v1167, %v1167
    %v1172 = vpack.c.b16 %v1168, %v1168
    %v1175 = vsel %vm399, %v1089, %v1099
    %v1179 = vsel %vm399, %v1090, %v1100
    %v1183 = vsel %vm399, %v1091, %v1101
    %v1187 = vsel %vm399, %v1092, %v1102
    %v1191 = vsel %vm399, %v1109, %v1119
    %v1195 = vsel %vm399, %v1110, %v1120
    %v1199 = vsel %vm399, %v1111, %v1121
    %v1203 = vsel %vm399, %v1112, %v1122
    %v1207 = vsel %vm399, %v1129, %v1139
    %v1211 = vsel %vm399, %v1130, %v1140
    %v1215 = vsel %vm399, %v1131, %v1141
    %v1219 = vsel %vm399, %v1132, %v1142
    %v1223 = vsel %vm399, %v1149, %v1159
    %v1227 = vsel %vm399, %v1150, %v1160
    %v1231 = vsel %vm399, %v1151, %v1161
    %v1235 = vsel %vm399, %v1152, %v1162
    %v1237 = vld [vmem:[%s5] sm:$0xf]
    %v1238 = vld [vmem:[%s6] sm:$0xff]
    %1240 = vset.pattern.permute.xlu0 0
    %1241 = vperm.xlu0 %1240, %v1238
    %v1242 = vpop.permute.xlu0 %1241
    %v1245 = vsel %vm471, %v1237, 0
    %v1248 = vsel %vm399, %v1169, 0
    %v1251 = vsel %vm399, %v1170, 0
    %v1254 = vsel %vm399, %v1171, 0
    %v1257 = vsel %vm399, %v1172, 0
    %1259 = vmatpush.bf16.msra.mxu0 0
    %1260 = vmatpush.bf16.msra.mxu0 0
    %1261 = vmatpush.bf16.msra.mxu0 0
    %1262 = vmatpush.bf16.msra.mxu0 %v1248
    %1263 = vmatpush.bf16.msra.mxu0 %v1223
    %1264 = vmatpush.bf16.msra.mxu0 %v1207
    %1265 = vmatpush.bf16.msra.mxu0 %v1191
    %1266 = vmatpush.bf16.msra.mxu0 %v1175
    %1267 = vmatmul.bf16.gmra.mxu0 %v1245
    %v1268 = vpop.f32.mrf.mxu0
    %v1269 = vadd.f32 %v1242, %v1268
    %v1270 = vpop.f32.mrf.mxu0
    %1271 = vdwg.mxu0
    %1272 = vmatpush.bf16.msra.mxu0 0
    %1273 = vmatpush.bf16.msra.mxu0 0
    %1274 = vmatpush.bf16.msra.mxu0 0
    %1275 = vmatpush.bf16.msra.mxu0 %v1251
    %1276 = vmatpush.bf16.msra.mxu0 %v1227
    %1277 = vmatpush.bf16.msra.mxu0 %v1211
    %1278 = vmatpush.bf16.msra.mxu0 %v1195
    %1279 = vmatpush.bf16.msra.mxu0 %v1179
    %1280 = vmatmul.bf16.gmra.mxu0 %v1245
    %v1281 = vpop.f32.mrf.mxu0
    %v1282 = vadd.f32 %v1242, %v1281
    %v1283 = vpop.f32.mrf.mxu0
    %1284 = vdwg.mxu0
    %1285 = vmatpush.bf16.msra.mxu0 0
    %1286 = vmatpush.bf16.msra.mxu0 0
    %1287 = vmatpush.bf16.msra.mxu0 0
    %1288 = vmatpush.bf16.msra.mxu0 %v1254
    %1289 = vmatpush.bf16.msra.mxu0 %v1231
    %1290 = vmatpush.bf16.msra.mxu0 %v1215
    %1291 = vmatpush.bf16.msra.mxu0 %v1199
    %1292 = vmatpush.bf16.msra.mxu0 %v1183
    %1293 = vmatmul.bf16.gmra.mxu0 %v1245
    %v1294 = vpop.f32.mrf.mxu0
    %v1295 = vadd.f32 %v1242, %v1294
    %v1296 = vpop.f32.mrf.mxu0
    %1297 = vdwg.mxu0
    %1298 = vmatpush.bf16.msra.mxu0 0
    %1299 = vmatpush.bf16.msra.mxu0 0
    %1300 = vmatpush.bf16.msra.mxu0 0
    %1301 = vmatpush.bf16.msra.mxu0 %v1257
    %1302 = vmatpush.bf16.msra.mxu0 %v1235
    %1303 = vmatpush.bf16.msra.mxu0 %v1219
    %1304 = vmatpush.bf16.msra.mxu0 %v1203
    %1305 = vmatpush.bf16.msra.mxu0 %v1187
    %1306 = vmatmul.bf16.gmra.mxu0 %v1245
    %v1307 = vpop.f32.mrf.mxu0
    %v1308 = vadd.f32 %v1242, %v1307
    %v1309 = vpop.f32.mrf.mxu0
    %1310 = vdwg.mxu0
    %vm1311 = vcmp.gt.f32.partialorder %v1269, 0.0
    %vm1312 = vcmp.gt.f32.partialorder %v1282, 0.0
    %vm1313 = vcmp.gt.f32.partialorder %v1295, 0.0
    %vm1314 = vcmp.gt.f32.partialorder %v1308, 0.0
    %v1315 = vmul.f32 %v1269, 0.01
    %v1316 = vmul.f32 %v1282, 0.01
    %v1317 = vmul.f32 %v1295, 0.01
    %v1318 = vmul.f32 %v1308, 0.01
    %v1319 = vsel %vm1311, %v1269, %v1315
    %v1320 = vsel %vm1312, %v1282, %v1316
    %v1321 = vsel %vm1313, %v1295, %v1317
    %v1322 = vsel %vm1314, %v1308, %v1318
    %1323 = vst [vmem:[#allocation5] sm:$0xff] %v1319
    %1324 = vst [vmem:[#allocation5 + $0x8] sm:$0xff] %v1320
    %1325 = vst [vmem:[#allocation5 + $0x10] sm:$0xff] %v1321
    %1326 = vst [vmem:[#allocation5 + $0x18] sm:$0xff] %v1322
    // Predicated region
    $region34: #{tpu_custom_call.1} parent=1 // pred_check
      _
    $region35: #{tpu_custom_call.1} parent=1 // pred_check_branch
      %1328 = sbr.rel (0) target = $region37
    $region36: #{tpu_custom_call.1} parent=1 // pred_region
      %1330 = vsyncadd [#allocation4], 0
      %s1332 = sshll.u32 [#allocation5], 4
      %s1333 = int_to_ptr.vmem [resolvable:$true] %s1332
      %s1334 = sshll.u32 %s7, 4
      %s1335 = int_to_ptr.hbm [resolvable:$true] %s1334
      %1337 = dma.vmem_to_hbm [thread:$0]  %s1333, 512, %s1335, [#allocation4]
    $region37: #{tpu_custom_call.1} parent=1 // pred_fallthru
      _
    // Predicated region
    $region38: #{tpu_custom_call.1} parent=1 // pred_check
      _
    $region39: #{tpu_custom_call.1} parent=1 // pred_check_branch
      %1339 = sbr.rel (0) target = $region41
    $region40: #{tpu_custom_call.1} parent=1 // pred_region
      %1341 = dma.done [#allocation4], 512
    $region41: #{tpu_custom_call.1} parent=1 // pred_fallthru
      _
    %1342 = vsyncpa [#allocation3], 1
    %1343 = vsyncpa [#allocation4], 1

</llo_original>
